<compile_context>
chip_gen: v7x
topology: tpu7x:2x2x1
jax: 0.10.0
libtpu: 0.0.40
codegen_flags: <defaults>
</compile_context>

<pallas_src>
import functools

import jax
import jax.numpy as jnp
from jax import lax
from jax.experimental import pallas as pl
from jax.experimental.pallas import tpu as pltpu

N_TAGS = 10                 # MUFold_ss(10, dropout)
KERNEL_SIZES = (1, 3, 5)    # static conv branch sizes
KMAX = max(KERNEL_SIZES)
NPAD = 128                  # lane-dense projection width; logits live in cols [:N_TAGS]


# ----------------------------------------------------------------------------
# Pallas kernel 1: fully fused CNN
#   two branch-fused inception blocks (1-D "same" conv as one deep im2col
#   matmul each) + 1x1 tag projection + sequence-mask multiply, all in VMEM.
# ----------------------------------------------------------------------------
def _cnn_fused_kernel(lens_ref,                              # SMEM scalar prefetch (B,)
                      x_ref, w1_ref, b1_ref, w2_ref, b2_ref, pw_ref, pb_ref,
                      o_ref,
                      xp_ref, h1p_ref,                       # VMEM scratch (halo slabs)
                      *, L, C, H3, K):
    # x_ref : (1, L, C)       bf16
    # w1_ref: (K*C, H3)       bf16   branch-fused block-1 conv weights
    # w2_ref: (K*H3, H3)      bf16   branch-fused block-2 conv weights
    # pw_ref: (H3, NPAD)      bf16   1x1 projection (zero-padded past N_TAGS)
    # o_ref : (1, L, NPAD)    bf16
    b = pl.program_id(0)
    pad = (K - 1) // 2

    # ---- block 1: halo'd input slab in VMEM (no wrapper jnp.pad) -----------
    xp_ref[...] = jnp.zeros(xp_ref.shape, xp_ref.dtype)
    xp_ref[pad:pad + L, :] = x_ref[0]
    # im2col in VMEM: one deep matmul (contraction K*C) instead of K shallow ones
    cols1 = jnp.concatenate([xp_ref[d:d + L, :] for d in range(K)], axis=1)   # (L, K*C)
    h1 = jnp.maximum(
        jnp.dot(cols1, w1_ref[...], preferred_element_type=jnp.float32) + b1_ref[...],
        0.0)                                                                  # (L, H3) f32

    # ---- block 2: intermediate stays in VMEM scratch (no HBM round trip) ---
    h1p_ref[...] = jnp.zeros(h1p_ref.shape, h1p_ref.dtype)
    h1p_ref[pad:pad + L, :] = h1.astype(h1p_ref.dtype)
    cols2 = jnp.concatenate([h1p_ref[d:d + L, :] for d in range(K)], axis=1)  # (L, K*H3)
    h2 = jnp.maximum(
        jnp.dot(cols2, w2_ref[...], preferred_element_type=jnp.float32) + b2_ref[...],
        0.0)                                                                  # (L, H3) f32

    # ---- 1x1 projection to lane-padded tag scores, fused with seq mask -----
    logits = jnp.dot(h2.astype(jnp.bfloat16), pw_ref[...],
                     preferred_element_type=jnp.float32) + pb_ref[...]        # (L, NPAD)
    live = (lax.broadcasted_iota(jnp.int32, (L, 1), 0) < lens_ref[b]).astype(jnp.float32)
    o_ref[0] = (logits * live).astype(o_ref.dtype)


def cnn_fused(x_blc, params, lengths):
    # x_blc: (B, L, C) bf16  ->  (B, L, NPAD) bf16 masked padded logits
    B, L, C = x_blc.shape
    w1, b1 = params["w1"], params["b1"]
    w2, b2 = params["w2"], params["b2"]
    pw, pb = params["proj_w"], params["proj_b"]
    H3 = w1.shape[1]
    K = w1.shape[0] // C
    # TODO(synk): for very long L add an L-tile grid axis (halo via shifted
    # slices) so the per-step VMEM footprint stays bounded and DMA overlaps.
    return pl.pallas_call(
        functools.partial(_cnn_fused_kernel, L=L, C=C, H3=H3, K=K),
        out_shape=jax.ShapeDtypeStruct((B, L, NPAD), jnp.bfloat16),
        grid_spec=pltpu.PrefetchScalarGridSpec(
            num_scalar_prefetch=1,
            grid=(B,),
            in_specs=[
                pl.BlockSpec((1, L, C), lambda b, lens: (b, 0, 0)),
                pl.BlockSpec((K * C, H3), lambda b, lens: (0, 0)),
                pl.BlockSpec((1, H3), lambda b, lens: (0, 0)),
                pl.BlockSpec((K * H3, H3), lambda b, lens: (0, 0)),
                pl.BlockSpec((1, H3), lambda b, lens: (0, 0)),
                pl.BlockSpec((H3, NPAD), lambda b, lens: (0, 0)),
                pl.BlockSpec((1, NPAD), lambda b, lens: (0, 0)),
            ],
            out_specs=pl.BlockSpec((1, L, NPAD), lambda b, lens: (b, 0, 0)),
            scratch_shapes=[
                pltpu.VMEM((L + K - 1, C), jnp.bfloat16),    # halo'd input slab
                pltpu.VMEM((L + K - 1, H3), jnp.bfloat16),   # halo'd block-1 output
            ],
        ),
        compiler_params=pltpu.CompilerParams(dimension_semantics=("parallel",)),
    )(lengths.astype(jnp.int32), x_blc, w1, b1.reshape(1, H3),
      w2, b2.reshape(1, H3), pw, pb.reshape(1, NPAD))


# ----------------------------------------------------------------------------
# Pallas kernel 2: CRF Viterbi decode (forward DP + backtrace), length-masked.
#   Batch lives on the lane axis:
#     emissions (L, T, B) bf16, delta (T, B) f32, backpointers (L, T, B) i32.
# ----------------------------------------------------------------------------
def _viterbi_kernel(emit_ref, trans_t_ref, start_ref, len_ref, path_ref,
                    delta_ref, bp_ref):
    # trans_t_ref[j, i] = transitions[i -> j]; start_ref: (T, 1); len_ref: (1, Bb)
    L, T, Bb = emit_ref.shape

    trans_t = trans_t_ref[...]                                              # (T, T) resident
    lens = len_ref[...]                                                     # (1, Bb) int32
    iota_tag = lax.broadcasted_iota(jnp.int32, (T, Bb), 0)                  # tag index

    # init: delta[j, b] = start[j] + emit[0, j, b]   (lengths >= 1 assumed)
    delta_ref[...] = start_ref[...] + emit_ref[0].astype(jnp.float32)

    def step(t, carry):
        delta = delta_ref[...]                                              # (T, Bb)
        # best[j, b] = max_i (delta[i, b] + trans[i, j]); first argmax (torch tie-break)
        # transition column broadcast in-loop from the small (T, T) tile (vreg pressure)
        best = delta[0:1, :] + trans_t[:, 0:1]                              # (T, Bb)
        bp = jnp.zeros((T, Bb), jnp.int32)
        for i in range(1, T):                                               # unrolled, T=10
            cand = delta[i:i + 1, :] + trans_t[:, i:i + 1]
            upd = cand > best
            best = jnp.where(upd, cand, best)
            bp = jnp.where(upd, i, bp)
        new_delta = best + emit_ref[t].astype(jnp.float32)
        live = t < lens                                                     # (1, Bb) bool
        delta_ref[...] = jnp.where(live, new_delta, delta)                  # freeze if padded
        bp_ref[t] = jnp.where(live, bp, iota_tag)                           # identity bp if padded
        return carry

    lax.fori_loop(1, L, step, 0)

    # final best tag per sequence (padded steps never changed delta)
    delta = delta_ref[...]
    best = delta[0:1, :]
    cur = jnp.zeros((1, Bb), jnp.int32)
    for j in range(1, T):
        cand = delta[j:j + 1, :]
        upd = cand > best
        best = jnp.where(upd, cand, best)
        cur = jnp.where(upd, j, cur)
    path_ref[L - 1] = cur

    def back(i, cur):
        t = L - 2 - i
        bp_t1 = bp_ref[t + 1]                                               # (T, Bb)
        nxt = bp_t1[0:1, :]
        for j in range(1, T):                                               # gather bp[cur]
            nxt = jnp.where(cur == j, bp_t1[j:j + 1, :], nxt)
        path_ref[t] = nxt
        return nxt

    lax.fori_loop(0, L - 1, back, cur)


def viterbi_decode(emissions_ltb, transitions, start, lengths):
    L, T, B = emissions_ltb.shape
    # Cap the lane-axis batch tile at 128 so VMEM (emissions dbl-buffer + bp
    # scratch) stays bounded on v7x and the "parallel" axis gets >= 2 blocks.
    if B > 128:
        bB = 128
        Bp = ((B + 127) // 128) * 128
    else:
        bB = B
        Bp = B
    if Bp != B:
        emissions_ltb = jnp.pad(emissions_ltb, ((0, 0), (0, 0), (0, Bp - B)))
        lengths = jnp.pad(lengths, (0, Bp - B))
    len_row = lengths.astype(jnp.int32).reshape(1, Bp)

    return pl.pallas_call(
        _viterbi_kernel,
        out_shape=jax.ShapeDtypeStruct((L, 1, Bp), jnp.int32),
        grid=(Bp // bB,),
        in_specs=[
            pl.BlockSpec((L, T, bB), lambda i: (0, 0, i)),
            pl.BlockSpec((T, T), lambda i: (0, 0)),
            pl.BlockSpec((T, 1), lambda i: (0, 0)),
            pl.BlockSpec((1, bB), lambda i: (0, i)),
        ],
        out_specs=pl.BlockSpec((L, 1, bB), lambda i: (0, 0, i)),
        scratch_shapes=[
            pltpu.VMEM((T, bB), jnp.float32),     # delta
            # TODO(synk): int8 (or HBM-streamed) backpointers would shrink this
            # ~4x for long L on v7x; kept int32 for lowering robustness.
            pltpu.VMEM((L, T, bB), jnp.int32),    # backpointers
        ],
        compiler_params=pltpu.CompilerParams(dimension_semantics=("parallel",)),
    )(emissions_ltb, transitions.T, start.reshape(T, 1), len_row)


# ----------------------------------------------------------------------------
# Parameter init (branch weights fused at init time) and full forward
# ----------------------------------------------------------------------------
def init_params(key, in_dim, hidden, n_tags):
    def nrm(k, shape, scale=0.1):
        return scale * jax.random.normal(k, shape, dtype=jnp.float32)

    keys = iter(jax.random.split(key, 32))

    def fused_conv_weights(c_in):
        # Per-branch conv weights (k, c_in, hidden) embedded in one
        # (KMAX*c_in, 3*hidden) matrix so a whole inception block is a single
        # fused im2col matmul (k=1/k=3 taps centered, zeros elsewhere).
        n_out = hidden * len(KERNEL_SIZES)
        w_fused = jnp.zeros((KMAX, c_in, n_out), jnp.float32)
        biases = []
        for bi, k in enumerate(KERNEL_SIZES):
            wk = nrm(next(keys), (k, c_in, hidden))
            off = (KMAX - k) // 2                          # center the k taps
            w_fused = w_fused.at[off:off + k, :, bi * hidden:(bi + 1) * hidden].set(wk)
            biases.append(nrm(next(keys), (hidden,)))
        return (w_fused.reshape(KMAX * c_in, n_out).astype(jnp.bfloat16),
                jnp.concatenate(biases))

    params = {}
    params["w1"], params["b1"] = fused_conv_weights(in_dim)
    c1 = hidden * len(KERNEL_SIZES)
    params["w2"], params["b2"] = fused_conv_weights(c1)
    c2 = hidden * len(KERNEL_SIZES)
    pw = nrm(next(keys), (c2, n_tags))
    pb = nrm(next(keys), (n_tags,))
    # keep the explicit zero-pad past N_TAGS: padded logit columns must stay 0
    params["proj_w"] = (jnp.zeros((c2, NPAD), jnp.float32)
                        .at[:, :n_tags].set(pw).astype(jnp.bfloat16))
    params["proj_b"] = jnp.zeros((NPAD,), jnp.float32).at[:n_tags].set(pb)
    params["trans"] = nrm(next(keys), (n_tags, n_tags))    # CRF transitions i -> j
    params["start"] = nrm(next(keys), (n_tags,))           # CRF start scores
    return params


def cnn_crf_forward(params, x_blc, lengths):
    B, L, _ = x_blc.shape
    lengths = lengths.astype(jnp.int32)

    # Fully fused CNN: inception x2 + 1x1 projection + mask in ONE kernel.
    # TODO(synk): dropout (p=0.4) is a no-op at inference; omitted.
    logits_pad = cnn_fused(x_blc.astype(jnp.bfloat16), params, lengths)       # (B, L, NPAD) bf16

    logits = logits_pad[:, :, :N_TAGS]                                        # (B, L, T) bf16
    feats_lbt = jnp.transpose(logits.astype(jnp.float32), (1, 0, 2))          # `.t()` -> (L, B, T)

    # TODO(synk): the (B,L,T)->(L,T,B) transpose is the remaining XLA glue; a
    # batch-on-lanes emission writer would need a transposing BlockSpec.
    emissions_ltb = jnp.transpose(logits, (1, 2, 0))                          # (L, T, B) bf16
    path_l1b = viterbi_decode(emissions_ltb, params["trans"], params["start"], lengths)

    mask_bl = jnp.arange(L)[None, :] < lengths[:, None]                       # (B, L)
    path_bl = jnp.where(mask_bl, jnp.transpose(path_l1b[:, 0, :B], (1, 0)), 0)

    return feats_lbt, path_bl


if __name__ == "__main__":
    key = jax.random.PRNGKey(0)
    k_x, k_p = jax.random.split(key)

    B, L, C_IN, HIDDEN = 2, 16, 12, 16
    x = jax.random.normal(k_x, (B, L, C_IN), dtype=jnp.float32)
    lengths = jnp.array([16, 11], dtype=jnp.int32)

    params = init_params(k_p, C_IN, HIDDEN, N_TAGS)

    fwd = jax.jit(cnn_crf_forward)
    feats, path = fwd(params, x, lengths)
    jax.block_until_ready((feats, path))

    assert feats.shape == (L, B, N_TAGS)
    assert path.shape == (B, L)
    print("KERNEL_OK")
</pallas_src>

<mosaic_0001>
module attributes {stable_mosaic.version = 11 : i64} {
  func.func @_cnn_fused_kernel(%arg0: i32, %arg1: memref<2xi32, #tpu.memory_space<smem>>, %arg2: memref<1x16x12xbf16, #tpu.memory_space<vmem>>, %arg3: memref<60x48xbf16, #tpu.memory_space<vmem>>, %arg4: memref<1x48xf32, #tpu.memory_space<vmem>>, %arg5: memref<240x48xbf16, #tpu.memory_space<vmem>>, %arg6: memref<1x48xf32, #tpu.memory_space<vmem>>, %arg7: memref<48x128xbf16, #tpu.memory_space<vmem>>, %arg8: memref<1x128xf32, #tpu.memory_space<vmem>>, %arg9: memref<1x16x128xbf16, #tpu.memory_space<vmem>>, %arg10: memref<20x12xbf16, #tpu.memory_space<vmem>>, %arg11: memref<20x48xbf16, #tpu.memory_space<vmem>>) attributes {dimension_semantics = [#tpu.dimension_semantics<parallel>], iteration_bounds = array<i64: 2>, scalar_prefetch = 1 : i64, scratch_operands = 2 : i64, tpu.core_type = #tpu.core_type<tc>, window_params = [{transform_indices = @transform_0, window_bounds = array<i64: 1, 16, 12>}, {pipeline_mode = #tpu.pipeline_mode<synchronous>, transform_indices = @transform_1, window_bounds = array<i64: 60, 48>}, {pipeline_mode = #tpu.pipeline_mode<synchronous>, transform_indices = @transform_2, window_bounds = array<i64: 1, 48>}, {pipeline_mode = #tpu.pipeline_mode<synchronous>, transform_indices = @transform_3, window_bounds = array<i64: 240, 48>}, {pipeline_mode = #tpu.pipeline_mode<synchronous>, transform_indices = @transform_4, window_bounds = array<i64: 1, 48>}, {pipeline_mode = #tpu.pipeline_mode<synchronous>, transform_indices = @transform_5, window_bounds = array<i64: 48, 128>}, {pipeline_mode = #tpu.pipeline_mode<synchronous>, transform_indices = @transform_6, window_bounds = array<i64: 1, 128>}, {transform_indices = @transform_7, window_bounds = array<i64: 1, 16, 128>}]} {
    %cst = arith.constant 0.000000e+00 : bf16
    %0 = vector.broadcast %cst : bf16 to vector<20x12xbf16>
    %c0 = arith.constant 0 : index
    %c0_0 = arith.constant 0 : index
    %1 = vector.load %arg10[%c0, %c0_0] : memref<20x12xbf16, #tpu.memory_space<vmem>>, vector<20x12xbf16>
    tpu.vector_store %arg10[%c0, %c0_0], %0 {strides = array<i32>} : memref<20x12xbf16, #tpu.memory_space<vmem>>, vector<20x12xbf16>,
    %c0_1 = arith.constant 0 : index
    %c0_2 = arith.constant 0 : index
    %c0_3 = arith.constant 0 : index
    %2 = vector.load %arg2[%c0_1, %c0_2, %c0_3] : memref<1x16x12xbf16, #tpu.memory_space<vmem>>, vector<1x16x12xbf16>
    %3 = vector.shape_cast %2 : vector<1x16x12xbf16> to vector<16x12xbf16>
    %c2 = arith.constant 2 : index
    %c0_4 = arith.constant 0 : index
    %4 = vector.load %arg10[%c2, %c0_4] : memref<20x12xbf16, #tpu.memory_space<vmem>>, vector<16x12xbf16>
    tpu.vector_store %arg10[%c2, %c0_4], %3 {strides = array<i32>} : memref<20x12xbf16, #tpu.memory_space<vmem>>, vector<16x12xbf16>,
    %c0_5 = arith.constant 0 : index
    %c0_6 = arith.constant 0 : index
    %5 = vector.load %arg10[%c0_5, %c0_6] : memref<20x12xbf16, #tpu.memory_space<vmem>>, vector<16x12xbf16>
    %c1 = arith.constant 1 : index
    %c0_7 = arith.constant 0 : index
    %6 = vector.load %arg10[%c1, %c0_7] : memref<20x12xbf16, #tpu.memory_space<vmem>>, vector<16x12xbf16>
    %c2_8 = arith.constant 2 : index
    %c0_9 = arith.constant 0 : index
    %7 = vector.load %arg10[%c2_8, %c0_9] : memref<20x12xbf16, #tpu.memory_space<vmem>>, vector<16x12xbf16>
    %c3 = arith.constant 3 : index
    %c0_10 = arith.constant 0 : index
    %8 = vector.load %arg10[%c3, %c0_10] : memref<20x12xbf16, #tpu.memory_space<vmem>>, vector<16x12xbf16>
    %c4 = arith.constant 4 : index
    %c0_11 = arith.constant 0 : index
    %9 = vector.load %arg10[%c4, %c0_11] : memref<20x12xbf16, #tpu.memory_space<vmem>>, vector<16x12xbf16>
    %10 = tpu.concatenate %5, %6, %7, %8, %9 in 1 : vector<16x12xbf16>, vector<16x12xbf16>, vector<16x12xbf16>, vector<16x12xbf16>, vector<16x12xbf16> -> vector<16x60xbf16>
    %c0_12 = arith.constant 0 : index
    %c0_13 = arith.constant 0 : index
    %11 = vector.load %arg3[%c0_12, %c0_13] : memref<60x48xbf16, #tpu.memory_space<vmem>>, vector<60x48xbf16>
    %cst_14 = arith.constant dense<0.000000e+00> : vector<16x48xf32>
    %12 = tpu.matmul %10, %11, %cst_14 {dimension_numbers = #tpu.dot_dimension_numbers<[1], [0], [0], [1], [0, 0, 1, 1], [], []>} : vector<16x60xbf16>, vector<60x48xbf16>, vector<16x48xf32> -> vector<16x48xf32>
    %c0_15 = arith.constant 0 : index
    %c0_16 = arith.constant 0 : index
    %13 = vector.load %arg4[%c0_15, %c0_16] : memref<1x48xf32, #tpu.memory_space<vmem>>, vector<1x48xf32>
    %14 = vector.broadcast %13 : vector<1x48xf32> to vector<16x48xf32>
    %15 = arith.addf %12, %14 : vector<16x48xf32>
    %cst_17 = arith.constant 0.000000e+00 : f32
    %16 = vector.broadcast %cst_17 : f32 to vector<16x48xf32>
    %17 = arith.maximumf %15, %16 : vector<16x48xf32>
    %cst_18 = arith.constant 0.000000e+00 : bf16
    %18 = vector.broadcast %cst_18 : bf16 to vector<20x48xbf16>
    %c0_19 = arith.constant 0 : index
    %c0_20 = arith.constant 0 : index
    %19 = vector.load %arg11[%c0_19, %c0_20] : memref<20x48xbf16, #tpu.memory_space<vmem>>, vector<20x48xbf16>
    tpu.vector_store %arg11[%c0_19, %c0_20], %18 {strides = array<i32>} : memref<20x48xbf16, #tpu.memory_space<vmem>>, vector<20x48xbf16>,
    %20 = arith.truncf %17 : vector<16x48xf32> to vector<16x48xbf16>
    %c2_21 = arith.constant 2 : index
    %c0_22 = arith.constant 0 : index
    %21 = vector.load %arg11[%c2_21, %c0_22] : memref<20x48xbf16, #tpu.memory_space<vmem>>, vector<16x48xbf16>
    tpu.vector_store %arg11[%c2_21, %c0_22], %20 {strides = array<i32>} : memref<20x48xbf16, #tpu.memory_space<vmem>>, vector<16x48xbf16>,
    %c0_23 = arith.constant 0 : index
    %c0_24 = arith.constant 0 : index
    %22 = vector.load %arg11[%c0_23, %c0_24] : memref<20x48xbf16, #tpu.memory_space<vmem>>, vector<16x48xbf16>
    %c1_25 = arith.constant 1 : index
    %c0_26 = arith.constant 0 : index
    %23 = vector.load %arg11[%c1_25, %c0_26] : memref<20x48xbf16, #tpu.memory_space<vmem>>, vector<16x48xbf16>
    %c2_27 = arith.constant 2 : index
    %c0_28 = arith.constant 0 : index
    %24 = vector.load %arg11[%c2_27, %c0_28] : memref<20x48xbf16, #tpu.memory_space<vmem>>, vector<16x48xbf16>
    %c3_29 = arith.constant 3 : index
    %c0_30 = arith.constant 0 : index
    %25 = vector.load %arg11[%c3_29, %c0_30] : memref<20x48xbf16, #tpu.memory_space<vmem>>, vector<16x48xbf16>
    %c4_31 = arith.constant 4 : index
    %c0_32 = arith.constant 0 : index
    %26 = vector.load %arg11[%c4_31, %c0_32] : memref<20x48xbf16, #tpu.memory_space<vmem>>, vector<16x48xbf16>
    %27 = tpu.concatenate %22, %23, %24, %25, %26 in 1 : vector<16x48xbf16>, vector<16x48xbf16>, vector<16x48xbf16>, vector<16x48xbf16>, vector<16x48xbf16> -> vector<16x240xbf16>
    %c0_33 = arith.constant 0 : index
    %c0_34 = arith.constant 0 : index
    %28 = vector.load %arg5[%c0_33, %c0_34] : memref<240x48xbf16, #tpu.memory_space<vmem>>, vector<240x48xbf16>
    %cst_35 = arith.constant dense<0.000000e+00> : vector<16x48xf32>
    %29 = tpu.matmul %27, %28, %cst_35 {dimension_numbers = #tpu.dot_dimension_numbers<[1], [0], [0], [1], [0, 0, 1, 1], [], []>} : vector<16x240xbf16>, vector<240x48xbf16>, vector<16x48xf32> -> vector<16x48xf32>
    %c0_36 = arith.constant 0 : index
    %c0_37 = arith.constant 0 : index
    %30 = vector.load %arg6[%c0_36, %c0_37] : memref<1x48xf32, #tpu.memory_space<vmem>>, vector<1x48xf32>
    %31 = vector.broadcast %30 : vector<1x48xf32> to vector<16x48xf32>
    %32 = arith.addf %29, %31 : vector<16x48xf32>
    %cst_38 = arith.constant 0.000000e+00 : f32
    %33 = vector.broadcast %cst_38 : f32 to vector<16x48xf32>
    %34 = arith.maximumf %32, %33 : vector<16x48xf32>
    %35 = arith.truncf %34 : vector<16x48xf32> to vector<16x48xbf16>
    %c0_39 = arith.constant 0 : index
    %c0_40 = arith.constant 0 : index
    %36 = vector.load %arg7[%c0_39, %c0_40] : memref<48x128xbf16, #tpu.memory_space<vmem>>, vector<48x128xbf16>
    %cst_41 = arith.constant dense<0.000000e+00> : vector<16x128xf32>
    %37 = tpu.matmul %35, %36, %cst_41 {dimension_numbers = #tpu.dot_dimension_numbers<[1], [0], [0], [1], [0, 0, 1, 1], [], []>} : vector<16x48xbf16>, vector<48x128xbf16>, vector<16x128xf32> -> vector<16x128xf32>
    %c0_42 = arith.constant 0 : index
    %c0_43 = arith.constant 0 : index
    %38 = vector.load %arg8[%c0_42, %c0_43] : memref<1x128xf32, #tpu.memory_space<vmem>>, vector<1x128xf32>
    %39 = vector.broadcast %38 : vector<1x128xf32> to vector<16x128xf32>
    %40 = arith.addf %37, %39 : vector<16x128xf32>
    %41 = tpu.iota {dimensions = array<i32: 0>} : vector<16x1xi32>
    %42 = arith.index_cast %arg0 : i32 to index
    %43 = memref.load %arg1[%42] : memref<2xi32, #tpu.memory_space<smem>>
    %44 = vector.broadcast %43 : i32 to vector<16x1xi32>
    %45 = arith.cmpi slt, %41, %44 : vector<16x1xi32>
    %46 = arith.extui %45 : vector<16x1xi1> to vector<16x1xi32>
    %47 = arith.sitofp %46 : vector<16x1xi32> to vector<16x1xf32>
    %48 = vector.broadcast %47 : vector<16x1xf32> to vector<16x128xf32>
    %49 = arith.mulf %40, %48 : vector<16x128xf32>
    %50 = arith.truncf %49 : vector<16x128xf32> to vector<16x128xbf16>
    %c0_44 = arith.constant 0 : index
    %c0_45 = arith.constant 0 : index
    %c0_46 = arith.constant 0 : index
    %51 = vector.load %arg9[%c0_44, %c0_45, %c0_46] : memref<1x16x128xbf16, #tpu.memory_space<vmem>>, vector<1x16x128xbf16>
    %52 = vector.shape_cast %51 : vector<1x16x128xbf16> to vector<16x128xbf16>
    %53 = vector.shape_cast %50 : vector<16x128xbf16> to vector<1x16x128xbf16>
    tpu.vector_store %arg9[%c0_44, %c0_45, %c0_46], %53 {strides = array<i32>} : memref<1x16x128xbf16, #tpu.memory_space<vmem>>, vector<1x16x128xbf16>,
    return
  }
  func.func @transform_0(%arg0: i32, %arg1: memref<2xi32, #tpu.memory_space<smem>>) -> (i32, i32, i32) {
    %c0_i32 = arith.constant 0 : i32
    %c0_i32_0 = arith.constant 0 : i32
    %c0_i32_1 = arith.constant 0 : i32
    return %arg0, %c0_i32, %c0_i32_0 : i32, i32, i32
  }
  func.func @transform_1(%arg0: i32, %arg1: memref<2xi32, #tpu.memory_space<smem>>) -> (i32, i32) {
    %c0_i32 = arith.constant 0 : i32
    %c0_i32_0 = arith.constant 0 : i32
    %c0_i32_1 = arith.constant 0 : i32
    return %c0_i32, %c0_i32_0 : i32, i32
  }
  func.func @transform_2(%arg0: i32, %arg1: memref<2xi32, #tpu.memory_space<smem>>) -> (i32, i32) {
    %c0_i32 = arith.constant 0 : i32
    %c0_i32_0 = arith.constant 0 : i32
    %c0_i32_1 = arith.constant 0 : i32
    return %c0_i32, %c0_i32_0 : i32, i32
  }
  func.func @transform_3(%arg0: i32, %arg1: memref<2xi32, #tpu.memory_space<smem>>) -> (i32, i32) {
    %c0_i32 = arith.constant 0 : i32
    %c0_i32_0 = arith.constant 0 : i32
    %c0_i32_1 = arith.constant 0 : i32
    return %c0_i32, %c0_i32_0 : i32, i32
  }
  func.func @transform_4(%arg0: i32, %arg1: memref<2xi32, #tpu.memory_space<smem>>) -> (i32, i32) {
    %c0_i32 = arith.constant 0 : i32
    %c0_i32_0 = arith.constant 0 : i32
    %c0_i32_1 = arith.constant 0 : i32
    return %c0_i32, %c0_i32_0 : i32, i32
  }
  func.func @transform_5(%arg0: i32, %arg1: memref<2xi32, #tpu.memory_space<smem>>) -> (i32, i32) {
    %c0_i32 = arith.constant 0 : i32
    %c0_i32_0 = arith.constant 0 : i32
    %c0_i32_1 = arith.constant 0 : i32
    return %c0_i32, %c0_i32_0 : i32, i32
  }
  func.func @transform_6(%arg0: i32, %arg1: memref<2xi32, #tpu.memory_space<smem>>) -> (i32, i32) {
    %c0_i32 = arith.constant 0 : i32
    %c0_i32_0 = arith.constant 0 : i32
    %c0_i32_1 = arith.constant 0 : i32
    return %c0_i32, %c0_i32_0 : i32, i32
  }
  func.func @transform_7(%arg0: i32, %arg1: memref<2xi32, #tpu.memory_space<smem>>) -> (i32, i32, i32) {
    %c0_i32 = arith.constant 0 : i32
    %c0_i32_0 = arith.constant 0 : i32
    %c0_i32_1 = arith.constant 0 : i32
    return %arg0, %c0_i32, %c0_i32_0 : i32, i32, i32
  }
}

module attributes {stable_mosaic.version = 11 : i64} {
  func.func @_viterbi_kernel(%arg0: i32, %arg1: memref<16x10x2xbf16, #tpu.memory_space<vmem>>, %arg2: memref<10x10xf32, #tpu.memory_space<vmem>>, %arg3: memref<10x1xf32, #tpu.memory_space<vmem>>, %arg4: memref<1x2xi32, #tpu.memory_space<vmem>>, %arg5: memref<16x1x2xi32, #tpu.memory_space<vmem>>, %arg6: memref<10x2xf32, #tpu.memory_space<vmem>>, %arg7: memref<16x10x2xi32, #tpu.memory_space<vmem>>) attributes {dimension_semantics = [#tpu.dimension_semantics<parallel>], iteration_bounds = array<i64: 1>, scalar_prefetch = 0 : i64, scratch_operands = 2 : i64, tpu.core_type = #tpu.core_type<tc>, window_params = [{transform_indices = @transform_0, window_bounds = array<i64: 16, 10, 2>}, {pipeline_mode = #tpu.pipeline_mode<synchronous>, transform_indices = @transform_1, window_bounds = array<i64: 10, 10>}, {pipeline_mode = #tpu.pipeline_mode<synchronous>, transform_indices = @transform_2, window_bounds = array<i64: 10, 1>}, {transform_indices = @transform_3, window_bounds = array<i64: 1, 2>}, {transform_indices = @transform_4, window_bounds = array<i64: 16, 1, 2>}]} {
    %c0 = arith.constant 0 : index
    %c0_0 = arith.constant 0 : index
    %0 = vector.load %arg2[%c0, %c0_0] : memref<10x10xf32, #tpu.memory_space<vmem>>, vector<10x10xf32>
    %c0_1 = arith.constant 0 : index
    %c0_2 = arith.constant 0 : index
    %1 = vector.load %arg4[%c0_1, %c0_2] : memref<1x2xi32, #tpu.memory_space<vmem>>, vector<1x2xi32>
    %2 = tpu.iota {dimensions = array<i32: 0>} : vector<10x2xi32>
    %c0_3 = arith.constant 0 : index
    %c0_4 = arith.constant 0 : index
    %3 = vector.load %arg3[%c0_3, %c0_4] : memref<10x1xf32, #tpu.memory_space<vmem>>, vector<10x1xf32>
    %c0_5 = arith.constant 0 : index
    %c0_6 = arith.constant 0 : index
    %c0_7 = arith.constant 0 : index
    %4 = vector.load %arg1[%c0_5, %c0_6, %c0_7] : memref<16x10x2xbf16, #tpu.memory_space<vmem>>, vector<1x10x2xbf16>
    %5 = vector.shape_cast %4 : vector<1x10x2xbf16> to vector<10x2xbf16>
    %6 = arith.extf %5 : vector<10x2xbf16> to vector<10x2xf32>
    %7 = vector.broadcast %3 : vector<10x1xf32> to vector<10x2xf32>
    %8 = arith.addf %7, %6 : vector<10x2xf32>
    %c0_8 = arith.constant 0 : index
    %c0_9 = arith.constant 0 : index
    %9 = vector.load %arg6[%c0_8, %c0_9] : memref<10x2xf32, #tpu.memory_space<vmem>>, vector<10x2xf32>
    tpu.vector_store %arg6[%c0_8, %c0_9], %8 {strides = array<i32>} : memref<10x2xf32, #tpu.memory_space<vmem>>, vector<10x2xf32>,
    %c1_i32 = arith.constant 1 : i32
    %c15_i32 = arith.constant 15 : i32
    %10 = arith.addi %c1_i32, %c15_i32 : i32
    %c1_i32_10 = arith.constant 1 : i32
    scf.for %arg8 = %c1_i32 to %10 step %c1_i32_10  : i32 {
      %c0_21 = arith.constant 0 : index
      %c0_22 = arith.constant 0 : index
      %63 = vector.load %arg6[%c0_21, %c0_22] : memref<10x2xf32, #tpu.memory_space<vmem>>, vector<10x2xf32>
      %64 = vector.extract_strided_slice %63 {offsets = [0, 0], sizes = [1, 2], strides = [1, 1]} : vector<10x2xf32> to vector<1x2xf32>
      %65 = vector.extract_strided_slice %0 {offsets = [0, 0], sizes = [10, 1], strides = [1, 1]} : vector<10x10xf32> to vector<10x1xf32>
      %66 = vector.broadcast %64 : vector<1x2xf32> to vector<10x2xf32>
      %67 = vector.broadcast %65 : vector<10x1xf32> to vector<10x2xf32>
      %68 = arith.addf %66, %67 : vector<10x2xf32>
      %c0_i32_23 = arith.constant 0 : i32
      %69 = vector.broadcast %c0_i32_23 : i32 to vector<10x2xi32>
      %70 = vector.extract_strided_slice %63 {offsets = [1, 0], sizes = [1, 2], strides = [1, 1]} : vector<10x2xf32> to vector<1x2xf32>
      %71 = vector.extract_strided_slice %0 {offsets = [0, 1], sizes = [10, 1], strides = [1, 1]} : vector<10x10xf32> to vector<10x1xf32>
      %72 = vector.broadcast %70 : vector<1x2xf32> to vector<10x2xf32>
      %73 = vector.broadcast %71 : vector<10x1xf32> to vector<10x2xf32>
      %74 = arith.addf %72, %73 : vector<10x2xf32>
      %75 = arith.cmpf ogt, %74, %68 : vector<10x2xf32>
      %76 = arith.select %75, %74, %68 : vector<10x2xi1>, vector<10x2xf32>
      %c1_i32_24 = arith.constant 1 : i32
      %77 = vector.broadcast %c1_i32_24 : i32 to vector<10x2xi32>
      %78 = arith.select %75, %77, %69 : vector<10x2xi1>, vector<10x2xi32>
      %79 = vector.extract_strided_slice %63 {offsets = [2, 0], sizes = [1, 2], strides = [1, 1]} : vector<10x2xf32> to vector<1x2xf32>
      %80 = vector.extract_strided_slice %0 {offsets = [0, 2], sizes = [10, 1], strides = [1, 1]} : vector<10x10xf32> to vector<10x1xf32>
      %81 = vector.broadcast %79 : vector<1x2xf32> to vector<10x2xf32>
      %82 = vector.broadcast %80 : vector<10x1xf32> to vector<10x2xf32>
      %83 = arith.addf %81, %82 : vector<10x2xf32>
      %84 = arith.cmpf ogt, %83, %76 : vector<10x2xf32>
      %85 = arith.select %84, %83, %76 : vector<10x2xi1>, vector<10x2xf32>
      %c2_i32_25 = arith.constant 2 : i32
      %86 = vector.broadcast %c2_i32_25 : i32 to vector<10x2xi32>
      %87 = arith.select %84, %86, %78 : vector<10x2xi1>, vector<10x2xi32>
      %88 = vector.extract_strided_slice %63 {offsets = [3, 0], sizes = [1, 2], strides = [1, 1]} : vector<10x2xf32> to vector<1x2xf32>
      %89 = vector.extract_strided_slice %0 {offsets = [0, 3], sizes = [10, 1], strides = [1, 1]} : vector<10x10xf32> to vector<10x1xf32>
      %90 = vector.broadcast %88 : vector<1x2xf32> to vector<10x2xf32>
      %91 = vector.broadcast %89 : vector<10x1xf32> to vector<10x2xf32>
      %92 = arith.addf %90, %91 : vector<10x2xf32>
      %93 = arith.cmpf ogt, %92, %85 : vector<10x2xf32>
      %94 = arith.select %93, %92, %85 : vector<10x2xi1>, vector<10x2xf32>
      %c3_i32_26 = arith.constant 3 : i32
      %95 = vector.broadcast %c3_i32_26 : i32 to vector<10x2xi32>
      %96 = arith.select %93, %95, %87 : vector<10x2xi1>, vector<10x2xi32>
      %97 = vector.extract_strided_slice %63 {offsets = [4, 0], sizes = [1, 2], strides = [1, 1]} : vector<10x2xf32> to vector<1x2xf32>
      %98 = vector.extract_strided_slice %0 {offsets = [0, 4], sizes = [10, 1], strides = [1, 1]} : vector<10x10xf32> to vector<10x1xf32>
      %99 = vector.broadcast %97 : vector<1x2xf32> to vector<10x2xf32>
      %100 = vector.broadcast %98 : vector<10x1xf32> to vector<10x2xf32>
      %101 = arith.addf %99, %100 : vector<10x2xf32>
      %102 = arith.cmpf ogt, %101, %94 : vector<10x2xf32>
      %103 = arith.select %102, %101, %94 : vector<10x2xi1>, vector<10x2xf32>
      %c4_i32_27 = arith.constant 4 : i32
      %104 = vector.broadcast %c4_i32_27 : i32 to vector<10x2xi32>
      %105 = arith.select %102, %104, %96 : vector<10x2xi1>, vector<10x2xi32>
      %106 = vector.extract_strided_slice %63 {offsets = [5, 0], sizes = [1, 2], strides = [1, 1]} : vector<10x2xf32> to vector<1x2xf32>
      %107 = vector.extract_strided_slice %0 {offsets = [0, 5], sizes = [10, 1], strides = [1, 1]} : vector<10x10xf32> to vector<10x1xf32>
      %108 = vector.broadcast %106 : vector<1x2xf32> to vector<10x2xf32>
      %109 = vector.broadcast %107 : vector<10x1xf32> to vector<10x2xf32>
      %110 = arith.addf %108, %109 : vector<10x2xf32>
      %111 = arith.cmpf ogt, %110, %103 : vector<10x2xf32>
      %112 = arith.select %111, %110, %103 : vector<10x2xi1>, vector<10x2xf32>
      %c5_i32_28 = arith.constant 5 : i32
      %113 = vector.broadcast %c5_i32_28 : i32 to vector<10x2xi32>
      %114 = arith.select %111, %113, %105 : vector<10x2xi1>, vector<10x2xi32>
      %115 = vector.extract_strided_slice %63 {offsets = [6, 0], sizes = [1, 2], strides = [1, 1]} : vector<10x2xf32> to vector<1x2xf32>
      %116 = vector.extract_strided_slice %0 {offsets = [0, 6], sizes = [10, 1], strides = [1, 1]} : vector<10x10xf32> to vector<10x1xf32>
      %117 = vector.broadcast %115 : vector<1x2xf32> to vector<10x2xf32>
      %118 = vector.broadcast %116 : vector<10x1xf32> to vector<10x2xf32>
      %119 = arith.addf %117, %118 : vector<10x2xf32>
      %120 = arith.cmpf ogt, %119, %112 : vector<10x2xf32>
      %121 = arith.select %120, %119, %112 : vector<10x2xi1>, vector<10x2xf32>
      %c6_i32_29 = arith.constant 6 : i32
      %122 = vector.broadcast %c6_i32_29 : i32 to vector<10x2xi32>
      %123 = arith.select %120, %122, %114 : vector<10x2xi1>, vector<10x2xi32>
      %124 = vector.extract_strided_slice %63 {offsets = [7, 0], sizes = [1, 2], strides = [1, 1]} : vector<10x2xf32> to vector<1x2xf32>
      %125 = vector.extract_strided_slice %0 {offsets = [0, 7], sizes = [10, 1], strides = [1, 1]} : vector<10x10xf32> to vector<10x1xf32>
      %126 = vector.broadcast %124 : vector<1x2xf32> to vector<10x2xf32>
      %127 = vector.broadcast %125 : vector<10x1xf32> to vector<10x2xf32>
      %128 = arith.addf %126, %127 : vector<10x2xf32>
      %129 = arith.cmpf ogt, %128, %121 : vector<10x2xf32>
      %130 = arith.select %129, %128, %121 : vector<10x2xi1>, vector<10x2xf32>
      %c7_i32_30 = arith.constant 7 : i32
      %131 = vector.broadcast %c7_i32_30 : i32 to vector<10x2xi32>
      %132 = arith.select %129, %131, %123 : vector<10x2xi1>, vector<10x2xi32>
      %133 = vector.extract_strided_slice %63 {offsets = [8, 0], sizes = [1, 2], strides = [1, 1]} : vector<10x2xf32> to vector<1x2xf32>
      %134 = vector.extract_strided_slice %0 {offsets = [0, 8], sizes = [10, 1], strides = [1, 1]} : vector<10x10xf32> to vector<10x1xf32>
      %135 = vector.broadcast %133 : vector<1x2xf32> to vector<10x2xf32>
      %136 = vector.broadcast %134 : vector<10x1xf32> to vector<10x2xf32>
      %137 = arith.addf %135, %136 : vector<10x2xf32>
      %138 = arith.cmpf ogt, %137, %130 : vector<10x2xf32>
      %139 = arith.select %138, %137, %130 : vector<10x2xi1>, vector<10x2xf32>
      %c8_i32_31 = arith.constant 8 : i32
      %140 = vector.broadcast %c8_i32_31 : i32 to vector<10x2xi32>
      %141 = arith.select %138, %140, %132 : vector<10x2xi1>, vector<10x2xi32>
      %142 = vector.extract_strided_slice %63 {offsets = [9, 0], sizes = [1, 2], strides = [1, 1]} : vector<10x2xf32> to vector<1x2xf32>
      %143 = vector.extract_strided_slice %0 {offsets = [0, 9], sizes = [10, 1], strides = [1, 1]} : vector<10x10xf32> to vector<10x1xf32>
      %144 = vector.broadcast %142 : vector<1x2xf32> to vector<10x2xf32>
      %145 = vector.broadcast %143 : vector<10x1xf32> to vector<10x2xf32>
      %146 = arith.addf %144, %145 : vector<10x2xf32>
      %147 = arith.cmpf ogt, %146, %139 : vector<10x2xf32>
      %148 = arith.select %147, %146, %139 : vector<10x2xi1>, vector<10x2xf32>
      %c9_i32_32 = arith.constant 9 : i32
      %149 = vector.broadcast %c9_i32_32 : i32 to vector<10x2xi32>
      %150 = arith.select %147, %149, %141 : vector<10x2xi1>, vector<10x2xi32>
      %151 = arith.index_cast %arg8 : i32 to index
      %c0_33 = arith.constant 0 : index
      %c0_34 = arith.constant 0 : index
      %152 = vector.load %arg1[%151, %c0_33, %c0_34] : memref<16x10x2xbf16, #tpu.memory_space<vmem>>, vector<1x10x2xbf16>
      %153 = vector.shape_cast %152 : vector<1x10x2xbf16> to vector<10x2xbf16>
      %154 = arith.extf %153 : vector<10x2xbf16> to vector<10x2xf32>
      %155 = arith.addf %148, %154 : vector<10x2xf32>
      %156 = vector.broadcast %arg8 : i32 to vector<1x2xi32>
      %157 = arith.cmpi slt, %156, %1 : vector<1x2xi32>
      %158 = vector.shape_cast %157 : vector<1x2xi1> to vector<1x2xi1>
      %159 = vector.broadcast %158 : vector<1x2xi1> to vector<10x2xi1>
      %160 = arith.select %159, %155, %63 : vector<10x2xi1>, vector<10x2xf32>
      %c0_35 = arith.constant 0 : index
      %c0_36 = arith.constant 0 : index
      %161 = vector.load %arg6[%c0_35, %c0_36] : memref<10x2xf32, #tpu.memory_space<vmem>>, vector<10x2xf32>
      tpu.vector_store %arg6[%c0_35, %c0_36], %160 {strides = array<i32>} : memref<10x2xf32, #tpu.memory_space<vmem>>, vector<10x2xf32>,
      %162 = vector.shape_cast %157 : vector<1x2xi1> to vector<1x2xi1>
      %163 = vector.broadcast %162 : vector<1x2xi1> to vector<10x2xi1>
      %164 = arith.select %163, %150, %2 : vector<10x2xi1>, vector<10x2xi32>
      %165 = arith.index_cast %arg8 : i32 to index
      %c0_37 = arith.constant 0 : index
      %c0_38 = arith.constant 0 : index
      %166 = vector.load %arg7[%165, %c0_37, %c0_38] : memref<16x10x2xi32, #tpu.memory_space<vmem>>, vector<1x10x2xi32>
      %167 = vector.shape_cast %166 : vector<1x10x2xi32> to vector<10x2xi32>
      %168 = vector.shape_cast %164 : vector<10x2xi32> to vector<1x10x2xi32>
      tpu.vector_store %arg7[%165, %c0_37, %c0_38], %168 {strides = array<i32>} : memref<16x10x2xi32, #tpu.memory_space<vmem>>, vector<1x10x2xi32>,
    }
    %c15_i32_11 = arith.constant 15 : i32
    %c0_12 = arith.constant 0 : index
    %c0_13 = arith.constant 0 : index
    %11 = vector.load %arg6[%c0_12, %c0_13] : memref<10x2xf32, #tpu.memory_space<vmem>>, vector<10x2xf32>
    %12 = vector.extract_strided_slice %11 {offsets = [0, 0], sizes = [1, 2], strides = [1, 1]} : vector<10x2xf32> to vector<1x2xf32>
    %c0_i32 = arith.constant 0 : i32
    %13 = vector.broadcast %c0_i32 : i32 to vector<1x2xi32>
    %14 = vector.extract_strided_slice %11 {offsets = [1, 0], sizes = [1, 2], strides = [1, 1]} : vector<10x2xf32> to vector<1x2xf32>
    %15 = arith.cmpf ogt, %14, %12 : vector<1x2xf32>
    %16 = arith.select %15, %14, %12 : vector<1x2xi1>, vector<1x2xf32>
    %c1_i32_14 = arith.constant 1 : i32
    %17 = vector.broadcast %c1_i32_14 : i32 to vector<1x2xi32>
    %18 = arith.select %15, %17, %13 : vector<1x2xi1>, vector<1x2xi32>
    %19 = vector.extract_strided_slice %11 {offsets = [2, 0], sizes = [1, 2], strides = [1, 1]} : vector<10x2xf32> to vector<1x2xf32>
    %20 = arith.cmpf ogt, %19, %16 : vector<1x2xf32>
    %21 = arith.select %20, %19, %16 : vector<1x2xi1>, vector<1x2xf32>
    %c2_i32 = arith.constant 2 : i32
    %22 = vector.broadcast %c2_i32 : i32 to vector<1x2xi32>
    %23 = arith.select %20, %22, %18 : vector<1x2xi1>, vector<1x2xi32>
    %24 = vector.extract_strided_slice %11 {offsets = [3, 0], sizes = [1, 2], strides = [1, 1]} : vector<10x2xf32> to vector<1x2xf32>
    %25 = arith.cmpf ogt, %24, %21 : vector<1x2xf32>
    %26 = arith.select %25, %24, %21 : vector<1x2xi1>, vector<1x2xf32>
    %c3_i32 = arith.constant 3 : i32
    %27 = vector.broadcast %c3_i32 : i32 to vector<1x2xi32>
    %28 = arith.select %25, %27, %23 : vector<1x2xi1>, vector<1x2xi32>
    %29 = vector.extract_strided_slice %11 {offsets = [4, 0], sizes = [1, 2], strides = [1, 1]} : vector<10x2xf32> to vector<1x2xf32>
    %30 = arith.cmpf ogt, %29, %26 : vector<1x2xf32>
    %31 = arith.select %30, %29, %26 : vector<1x2xi1>, vector<1x2xf32>
    %c4_i32 = arith.constant 4 : i32
    %32 = vector.broadcast %c4_i32 : i32 to vector<1x2xi32>
    %33 = arith.select %30, %32, %28 : vector<1x2xi1>, vector<1x2xi32>
    %34 = vector.extract_strided_slice %11 {offsets = [5, 0], sizes = [1, 2], strides = [1, 1]} : vector<10x2xf32> to vector<1x2xf32>
    %35 = arith.cmpf ogt, %34, %31 : vector<1x2xf32>
    %36 = arith.select %35, %34, %31 : vector<1x2xi1>, vector<1x2xf32>
    %c5_i32 = arith.constant 5 : i32
    %37 = vector.broadcast %c5_i32 : i32 to vector<1x2xi32>
    %38 = arith.select %35, %37, %33 : vector<1x2xi1>, vector<1x2xi32>
    %39 = vector.extract_strided_slice %11 {offsets = [6, 0], sizes = [1, 2], strides = [1, 1]} : vector<10x2xf32> to vector<1x2xf32>
    %40 = arith.cmpf ogt, %39, %36 : vector<1x2xf32>
    %41 = arith.select %40, %39, %36 : vector<1x2xi1>, vector<1x2xf32>
    %c6_i32 = arith.constant 6 : i32
    %42 = vector.broadcast %c6_i32 : i32 to vector<1x2xi32>
    %43 = arith.select %40, %42, %38 : vector<1x2xi1>, vector<1x2xi32>
    %44 = vector.extract_strided_slice %11 {offsets = [7, 0], sizes = [1, 2], strides = [1, 1]} : vector<10x2xf32> to vector<1x2xf32>
    %45 = arith.cmpf ogt, %44, %41 : vector<1x2xf32>
    %46 = arith.select %45, %44, %41 : vector<1x2xi1>, vector<1x2xf32>
    %c7_i32 = arith.constant 7 : i32
    %47 = vector.broadcast %c7_i32 : i32 to vector<1x2xi32>
    %48 = arith.select %45, %47, %43 : vector<1x2xi1>, vector<1x2xi32>
    %49 = vector.extract_strided_slice %11 {offsets = [8, 0], sizes = [1, 2], strides = [1, 1]} : vector<10x2xf32> to vector<1x2xf32>
    %50 = arith.cmpf ogt, %49, %46 : vector<1x2xf32>
    %51 = arith.select %50, %49, %46 : vector<1x2xi1>, vector<1x2xf32>
    %c8_i32 = arith.constant 8 : i32
    %52 = vector.broadcast %c8_i32 : i32 to vector<1x2xi32>
    %53 = arith.select %50, %52, %48 : vector<1x2xi1>, vector<1x2xi32>
    %54 = vector.extract_strided_slice %11 {offsets = [9, 0], sizes = [1, 2], strides = [1, 1]} : vector<10x2xf32> to vector<1x2xf32>
    %55 = arith.cmpf ogt, %54, %51 : vector<1x2xf32>
    %c9_i32 = arith.constant 9 : i32
    %56 = vector.broadcast %c9_i32 : i32 to vector<1x2xi32>
    %57 = arith.select %55, %56, %53 : vector<1x2xi1>, vector<1x2xi32>
    %c15 = arith.constant 15 : index
    %c0_15 = arith.constant 0 : index
    %c0_16 = arith.constant 0 : index
    %58 = vector.load %arg5[%c15, %c0_15, %c0_16] : memref<16x1x2xi32, #tpu.memory_space<vmem>>, vector<1x1x2xi32>
    %59 = vector.shape_cast %58 : vector<1x1x2xi32> to vector<1x2xi32>
    %60 = vector.shape_cast %57 : vector<1x2xi32> to vector<1x1x2xi32>
    tpu.vector_store %arg5[%c15, %c0_15, %c0_16], %60 {strides = array<i32>} : memref<16x1x2xi32, #tpu.memory_space<vmem>>, vector<1x1x2xi32>,
    %c0_i32_17 = arith.constant 0 : i32
    %c15_i32_18 = arith.constant 15 : i32
    %61 = arith.addi %c0_i32_17, %c15_i32_18 : i32
    %c1_i32_19 = arith.constant 1 : i32
    %62 = scf.for %arg8 = %c0_i32_17 to %61 step %c1_i32_19 iter_args(%arg9 = %57) -> (vector<1x2xi32>)  : i32 {
      %c14_i32 = arith.constant 14 : i32
      %63 = arith.subi %c14_i32, %arg8 : i32
      %c1_i32_21 = arith.constant 1 : i32
      %64 = arith.addi %63, %c1_i32_21 : i32
      %65 = arith.index_cast %64 : i32 to index
      %c0_22 = arith.constant 0 : index
      %c0_23 = arith.constant 0 : index
      %66 = vector.load %arg7[%65, %c0_22, %c0_23] : memref<16x10x2xi32, #tpu.memory_space<vmem>>, vector<1x10x2xi32>
      %67 = vector.shape_cast %66 : vector<1x10x2xi32> to vector<10x2xi32>
      %68 = vector.extract_strided_slice %67 {offsets = [0, 0], sizes = [1, 2], strides = [1, 1]} : vector<10x2xi32> to vector<1x2xi32>
      %c1_i32_24 = arith.constant 1 : i32
      %69 = vector.broadcast %c1_i32_24 : i32 to vector<1x2xi32>
      %70 = arith.cmpi eq, %arg9, %69 : vector<1x2xi32>
      %71 = vector.extract_strided_slice %67 {offsets = [1, 0], sizes = [1, 2], strides = [1, 1]} : vector<10x2xi32> to vector<1x2xi32>
      %72 = arith.select %70, %71, %68 : vector<1x2xi1>, vector<1x2xi32>
      %c2_i32_25 = arith.constant 2 : i32
      %73 = vector.broadcast %c2_i32_25 : i32 to vector<1x2xi32>
      %74 = arith.cmpi eq, %arg9, %73 : vector<1x2xi32>
      %75 = vector.extract_strided_slice %67 {offsets = [2, 0], sizes = [1, 2], strides = [1, 1]} : vector<10x2xi32> to vector<1x2xi32>
      %76 = arith.select %74, %75, %72 : vector<1x2xi1>, vector<1x2xi32>
      %c3_i32_26 = arith.constant 3 : i32
      %77 = vector.broadcast %c3_i32_26 : i32 to vector<1x2xi32>
      %78 = arith.cmpi eq, %arg9, %77 : vector<1x2xi32>
      %79 = vector.extract_strided_slice %67 {offsets = [3, 0], sizes = [1, 2], strides = [1, 1]} : vector<10x2xi32> to vector<1x2xi32>
      %80 = arith.select %78, %79, %76 : vector<1x2xi1>, vector<1x2xi32>
      %c4_i32_27 = arith.constant 4 : i32
      %81 = vector.broadcast %c4_i32_27 : i32 to vector<1x2xi32>
      %82 = arith.cmpi eq, %arg9, %81 : vector<1x2xi32>
      %83 = vector.extract_strided_slice %67 {offsets = [4, 0], sizes = [1, 2], strides = [1, 1]} : vector<10x2xi32> to vector<1x2xi32>
      %84 = arith.select %82, %83, %80 : vector<1x2xi1>, vector<1x2xi32>
      %c5_i32_28 = arith.constant 5 : i32
      %85 = vector.broadcast %c5_i32_28 : i32 to vector<1x2xi32>
      %86 = arith.cmpi eq, %arg9, %85 : vector<1x2xi32>
      %87 = vector.extract_strided_slice %67 {offsets = [5, 0], sizes = [1, 2], strides = [1, 1]} : vector<10x2xi32> to vector<1x2xi32>
      %88 = arith.select %86, %87, %84 : vector<1x2xi1>, vector<1x2xi32>
      %c6_i32_29 = arith.constant 6 : i32
      %89 = vector.broadcast %c6_i32_29 : i32 to vector<1x2xi32>
      %90 = arith.cmpi eq, %arg9, %89 : vector<1x2xi32>
      %91 = vector.extract_strided_slice %67 {offsets = [6, 0], sizes = [1, 2], strides = [1, 1]} : vector<10x2xi32> to vector<1x2xi32>
      %92 = arith.select %90, %91, %88 : vector<1x2xi1>, vector<1x2xi32>
      %c7_i32_30 = arith.constant 7 : i32
      %93 = vector.broadcast %c7_i32_30 : i32 to vector<1x2xi32>
      %94 = arith.cmpi eq, %arg9, %93 : vector<1x2xi32>
      %95 = vector.extract_strided_slice %67 {offsets = [7, 0], sizes = [1, 2], strides = [1, 1]} : vector<10x2xi32> to vector<1x2xi32>
      %96 = arith.select %94, %95, %92 : vector<1x2xi1>, vector<1x2xi32>
      %c8_i32_31 = arith.constant 8 : i32
      %97 = vector.broadcast %c8_i32_31 : i32 to vector<1x2xi32>
      %98 = arith.cmpi eq, %arg9, %97 : vector<1x2xi32>
      %99 = vector.extract_strided_slice %67 {offsets = [8, 0], sizes = [1, 2], strides = [1, 1]} : vector<10x2xi32> to vector<1x2xi32>
      %100 = arith.select %98, %99, %96 : vector<1x2xi1>, vector<1x2xi32>
      %c9_i32_32 = arith.constant 9 : i32
      %101 = vector.broadcast %c9_i32_32 : i32 to vector<1x2xi32>
      %102 = arith.cmpi eq, %arg9, %101 : vector<1x2xi32>
      %103 = vector.extract_strided_slice %67 {offsets = [9, 0], sizes = [1, 2], strides = [1, 1]} : vector<10x2xi32> to vector<1x2xi32>
      %104 = arith.select %102, %103, %100 : vector<1x2xi1>, vector<1x2xi32>
      %105 = arith.index_cast %63 : i32 to index
      %c0_33 = arith.constant 0 : index
      %c0_34 = arith.constant 0 : index
      %106 = vector.load %arg5[%105, %c0_33, %c0_34] : memref<16x1x2xi32, #tpu.memory_space<vmem>>, vector<1x1x2xi32>
      %107 = vector.shape_cast %106 : vector<1x1x2xi32> to vector<1x2xi32>
      %108 = vector.shape_cast %104 : vector<1x2xi32> to vector<1x1x2xi32>
      tpu.vector_store %arg5[%105, %c0_33, %c0_34], %108 {strides = array<i32>} : memref<16x1x2xi32, #tpu.memory_space<vmem>>, vector<1x1x2xi32>,
      scf.yield %104 : vector<1x2xi32>
    }
    %c15_i32_20 = arith.constant 15 : i32
    return
  }
  func.func @transform_0(%arg0: i32) -> (i32, i32, i32) {
    %c0_i32 = arith.constant 0 : i32
    %c0_i32_0 = arith.constant 0 : i32
    %c0_i32_1 = arith.constant 0 : i32
    return %c0_i32, %c0_i32_0, %arg0 : i32, i32, i32
  }
  func.func @transform_1(%arg0: i32) -> (i32, i32) {
    %c0_i32 = arith.constant 0 : i32
    %c0_i32_0 = arith.constant 0 : i32
    %c0_i32_1 = arith.constant 0 : i32
    return %c0_i32, %c0_i32_0 : i32, i32
  }
  func.func @transform_2(%arg0: i32) -> (i32, i32) {
    %c0_i32 = arith.constant 0 : i32
    %c0_i32_0 = arith.constant 0 : i32
    %c0_i32_1 = arith.constant 0 : i32
    return %c0_i32, %c0_i32_0 : i32, i32
  }
  func.func @transform_3(%arg0: i32) -> (i32, i32) {
    %c0_i32 = arith.constant 0 : i32
    %c0_i32_0 = arith.constant 0 : i32
    return %c0_i32, %arg0 : i32, i32
  }
  func.func @transform_4(%arg0: i32) -> (i32, i32, i32) {
    %c0_i32 = arith.constant 0 : i32
    %c0_i32_0 = arith.constant 0 : i32
    %c0_i32_1 = arith.constant 0 : i32
    return %c0_i32, %c0_i32_0, %arg0 : i32, i32, i32
  }
}

</mosaic_0001>

<llo_original>
// kernel: cnn_crf_forward.3
$region0: #{cnn_crf_forward.3}
  #allocation0 [shape = 'u32[]', space=smem, size = 0x4, offset = 0x4, fixed_abs, tag = 'smem constant byte address 0x4 - core index']
  #allocation1 [shape = 'u32[144,128]{1,0:T(1,128)}', space=vmem, size = 0x12000, scoped, tag = 'internal scratch']
  #allocation2 [shape = 'f32[10,2]{1,0:T(8,128)}', space=vmem, size = 0x2000, scoped, tag = 'scratch operand']
  #allocation3 [shape = 's32[16,10,2]{2,1,0:T(8,128)}', space=vmem, size = 0x20000, scoped, tag = 'scratch operand']
  %s0 = inlined_call_operand.vmem [shape: bf16[16,10,2], index: 0, kind: input, shape index: {}]
  %s1 = inlined_call_operand.vmem [shape: f32[10,10], index: 1, kind: input, shape index: {}]
  %s2 = inlined_call_operand.vmem [shape: f32[10,1], index: 2, kind: input, shape index: {}]
  %s3 = inlined_call_operand.vmem [shape: s32[1,2], index: 3, kind: input, shape index: {}]
  %s4 = inlined_call_operand.vmem [shape: s32[16,1,2], index: 4, kind: output, shape index: {}]
  %s5 = sld [smem:[#allocation0]]
  $region40: #{cnn_crf_forward.3} parent=0
    _
  %s7 = ssub.s32 1, %s5
  %s8 = scalar_select 0, %s7, %s5
  // Predicated region
  $region2: #{cnn_crf_forward.3} parent=0 // pred_check
    _
  $region3: #{cnn_crf_forward.3} parent=0 // pred_check_branch
    %10 = sbr.rel (0) target = $region5
  $region4: #{cnn_crf_forward.3} parent=0 // pred_region
    _
  $region5: #{cnn_crf_forward.3} parent=0 // pred_fallthru
    _
  // Predicated region
  $region6: #{cnn_crf_forward.3} parent=0 // pred_check
    _
  $region7: #{cnn_crf_forward.3} parent=0 // pred_check_branch
    %12 = sbr.rel (0) target = $region9
  $region8: #{cnn_crf_forward.3} parent=0 // pred_region
    _
  $region9: #{cnn_crf_forward.3} parent=0 // pred_fallthru
    _
  // Predicated region
  $region10: #{cnn_crf_forward.3} parent=0 // pred_check
    _
  $region11: #{cnn_crf_forward.3} parent=0 // pred_check_branch
    %14 = sbr.rel (0) target = $region13
  $region12: #{cnn_crf_forward.3} parent=0 // pred_region
    _
  $region13: #{cnn_crf_forward.3} parent=0 // pred_fallthru
    _
  // Predicated region
  $region14: #{cnn_crf_forward.3} parent=0 // pred_check
    _
  $region15: #{cnn_crf_forward.3} parent=0 // pred_check_branch
    %16 = sbr.rel (0) target = $region17
  $region16: #{cnn_crf_forward.3} parent=0 // pred_region
    _
  $region17: #{cnn_crf_forward.3} parent=0 // pred_fallthru
    _
  %v17 = vld [vmem:[%s1] sm:$0xff]
  %v18 = vld [vmem:[%s1 + $0x8] sm:$0x3]
  %v19 = vld [vmem:[%s3] sm:$0x1]
  %v20 = vlaneseq
  %v21 = vshrl.u32 %v20, 7
  %v22 = vadd.s32 %v21, 8
  %v23 = vld [vmem:[%s2] sm:$0xff]
  %v24 = vld [vmem:[%s2 + $0x8] sm:$0x3]
  %v25 = vld [vmem:[%s0] sm:$0xf]
  %v26 = vld [vmem:[%s0 + $0x4] sm:$0x1]
  %v27 = vunpack.c.l.bf16 %v25
  %v28 = vunpack.c.l.bf16 %v26
  %30 = vset.pattern.permute.xlu0 0
  %31 = vperm.xlu0 %30, %v23
  %v32 = vpop.permute.xlu0 %31
  %35 = vset.pattern.permute.xlu0 0
  %36 = vperm.xlu0 %35, %v24
  %v37 = vpop.permute.xlu0 %36
  %v39 = vadd.f32 %v32, %v27
  %v40 = vadd.f32 %v37, %v28
  %vm41 = vcmask 15360
  %42 = vst.msk [vmem:[#allocation2] sm:$0xff] %vm41, %v39
  %vm43 = vcmask 9216
  %44 = vst.msk [vmem:[#allocation2 + $0x8] sm:$0x3] %vm43, %v40
  loop: start=1, step=1, limit=16
  $region18: #{cnn_crf_forward.3} parent=0 // loop_pre_header
    _
  $region19: #{cnn_crf_forward.3} parent=0 // loop_header
    %s46 = sphi 1, %s50
    %p47 = scmp.ge.s32.totalorder %s46, 16
  $region20: #{cnn_crf_forward.3} parent=0 // loop_header_branch
    %49 = sbr.rel (%p47) target = $region24
  $region21: #{cnn_crf_forward.3} parent=0 // loop_body
    %v51 = vld [vmem:[#allocation2] sm:$0xff]
    %v52 = vld [vmem:[#allocation2 + $0x8] sm:$0x3]
    %v53 = vlaneseq
    %v54 = vshrl.u32 %v53, 7
    %v55 = vsub.s32 0, %v54
    %v56 = vrot.slane %v51, %v55
    %58 = vset.pattern.permute.xlu0 0
    %59 = vperm.xlu0 %58, %v17
    %v60 = vpop.permute.xlu0 %59
    %63 = vset.pattern.permute.xlu0 0
    %64 = vperm.xlu0 %63, %v18
    %v65 = vpop.permute.xlu0 %64
    %v67 = vadd.f32 %v56, %v60
    %v68 = vadd.f32 %v56, %v65
    %v69 = vlaneseq
    %v70 = vshrl.u32 %v69, 7
    %v71 = vsub.s32 1, %v70
    %v72 = vrot.slane %v51, %v71
    %73 = vset.pattern.permute.xlu0 1
    %74 = vperm.xlu0 %73, %v17
    %v75 = vpop.permute.xlu0 %74
    %77 = vset.pattern.permute.xlu0 1
    %78 = vperm.xlu0 %77, %v18
    %v79 = vpop.permute.xlu0 %78
    %v81 = vadd.f32 %v72, %v75
    %v82 = vadd.f32 %v72, %v79
    %vm83 = vcmp.gt.f32.partialorder %v81, %v67
    %vm84 = vcmp.gt.f32.partialorder %v82, %v68
    %v85 = vsel %vm83, %v81, %v67
    %v86 = vsel %vm84, %v82, %v68
    %v87 = vsel %vm83, 1, 0
    %v88 = vsel %vm84, 1, 0
    %v89 = vlaneseq
    %v90 = vshrl.u32 %v89, 7
    %v91 = vsub.s32 2, %v90
    %v92 = vrot.slane %v51, %v91
    %93 = vset.pattern.permute.xlu0 2
    %94 = vperm.xlu0 %93, %v17
    %v95 = vpop.permute.xlu0 %94
    %97 = vset.pattern.permute.xlu0 2
    %98 = vperm.xlu0 %97, %v18
    %v99 = vpop.permute.xlu0 %98
    %v101 = vadd.f32 %v92, %v95
    %v102 = vadd.f32 %v92, %v99
    %vm103 = vcmp.gt.f32.partialorder %v101, %v85
    %vm104 = vcmp.gt.f32.partialorder %v102, %v86
    %v105 = vsel %vm103, %v101, %v85
    %v106 = vsel %vm104, %v102, %v86
    %v107 = vsel %vm103, 2, %v87
    %v108 = vsel %vm104, 2, %v88
    %v109 = vlaneseq
    %v110 = vshrl.u32 %v109, 7
    %v111 = vsub.s32 3, %v110
    %v112 = vrot.slane %v51, %v111
    %113 = vset.pattern.permute.xlu0 3
    %114 = vperm.xlu0 %113, %v17
    %v115 = vpop.permute.xlu0 %114
    %117 = vset.pattern.permute.xlu0 3
    %118 = vperm.xlu0 %117, %v18
    %v119 = vpop.permute.xlu0 %118
    %v121 = vadd.f32 %v112, %v115
    %v122 = vadd.f32 %v112, %v119
    %vm123 = vcmp.gt.f32.partialorder %v121, %v105
    %vm124 = vcmp.gt.f32.partialorder %v122, %v106
    %v125 = vsel %vm123, %v121, %v105
    %v126 = vsel %vm124, %v122, %v106
    %v127 = vsel %vm123, 3, %v107
    %v128 = vsel %vm124, 3, %v108
    %v129 = vlaneseq
    %v130 = vshrl.u32 %v129, 7
    %v131 = vsub.s32 4, %v130
    %v132 = vrot.slane %v51, %v131
    %133 = vset.pattern.permute.xlu0 4
    %134 = vperm.xlu0 %133, %v17
    %v135 = vpop.permute.xlu0 %134
    %137 = vset.pattern.permute.xlu0 4
    %138 = vperm.xlu0 %137, %v18
    %v139 = vpop.permute.xlu0 %138
    %v141 = vadd.f32 %v132, %v135
    %v142 = vadd.f32 %v132, %v139
    %vm143 = vcmp.gt.f32.partialorder %v141, %v125
    %vm144 = vcmp.gt.f32.partialorder %v142, %v126
    %v145 = vsel %vm143, %v141, %v125
    %v146 = vsel %vm144, %v142, %v126
    %v147 = vsel %vm143, 4, %v127
    %v148 = vsel %vm144, 4, %v128
    %v149 = vlaneseq
    %v150 = vshrl.u32 %v149, 7
    %v151 = vsub.s32 5, %v150
    %v152 = vrot.slane %v51, %v151
    %153 = vset.pattern.permute.xlu0 5
    %154 = vperm.xlu0 %153, %v17
    %v155 = vpop.permute.xlu0 %154
    %157 = vset.pattern.permute.xlu0 5
    %158 = vperm.xlu0 %157, %v18
    %v159 = vpop.permute.xlu0 %158
    %v161 = vadd.f32 %v152, %v155
    %v162 = vadd.f32 %v152, %v159
    %vm163 = vcmp.gt.f32.partialorder %v161, %v145
    %vm164 = vcmp.gt.f32.partialorder %v162, %v146
    %v165 = vsel %vm163, %v161, %v145
    %v166 = vsel %vm164, %v162, %v146
    %v167 = vsel %vm163, 5, %v147
    %v168 = vsel %vm164, 5, %v148
    %v169 = vlaneseq
    %v170 = vshrl.u32 %v169, 7
    %v171 = vsub.s32 6, %v170
    %v172 = vrot.slane %v51, %v171
    %173 = vset.pattern.permute.xlu0 6
    %174 = vperm.xlu0 %173, %v17
    %v175 = vpop.permute.xlu0 %174
    %177 = vset.pattern.permute.xlu0 6
    %178 = vperm.xlu0 %177, %v18
    %v179 = vpop.permute.xlu0 %178
    %v181 = vadd.f32 %v172, %v175
    %v182 = vadd.f32 %v172, %v179
    %vm183 = vcmp.gt.f32.partialorder %v181, %v165
    %vm184 = vcmp.gt.f32.partialorder %v182, %v166
    %v185 = vsel %vm183, %v181, %v165
    %v186 = vsel %vm184, %v182, %v166
    %v187 = vsel %vm183, 6, %v167
    %v188 = vsel %vm184, 6, %v168
    %v189 = vlaneseq
    %v190 = vshrl.u32 %v189, 7
    %v191 = vsub.s32 7, %v190
    %v192 = vrot.slane %v51, %v191
    %193 = vset.pattern.permute.xlu0 7
    %194 = vperm.xlu0 %193, %v17
    %v195 = vpop.permute.xlu0 %194
    %197 = vset.pattern.permute.xlu0 7
    %198 = vperm.xlu0 %197, %v18
    %v199 = vpop.permute.xlu0 %198
    %v201 = vadd.f32 %v192, %v195
    %v202 = vadd.f32 %v192, %v199
    %vm203 = vcmp.gt.f32.partialorder %v201, %v185
    %vm204 = vcmp.gt.f32.partialorder %v202, %v186
    %v205 = vsel %vm203, %v201, %v185
    %v206 = vsel %vm204, %v202, %v186
    %v207 = vsel %vm203, 7, %v187
    %v208 = vsel %vm204, 7, %v188
    %v209 = vlaneseq
    %v210 = vshrl.u32 %v209, 7
    %v211 = vsub.s32 0, %v210
    %v212 = vrot.slane %v52, %v211
    %213 = vset.pattern.permute.xlu0 8
    %214 = vperm.xlu0 %213, %v17
    %v215 = vpop.permute.xlu0 %214
    %217 = vset.pattern.permute.xlu0 8
    %218 = vperm.xlu0 %217, %v18
    %v219 = vpop.permute.xlu0 %218
    %v221 = vadd.f32 %v212, %v215
    %v222 = vadd.f32 %v212, %v219
    %vm223 = vcmp.gt.f32.partialorder %v221, %v205
    %vm224 = vcmp.gt.f32.partialorder %v222, %v206
    %v225 = vsel %vm223, %v221, %v205
    %v226 = vsel %vm224, %v222, %v206
    %v227 = vsel %vm223, 8, %v207
    %v228 = vsel %vm224, 8, %v208
    %v229 = vlaneseq
    %v230 = vshrl.u32 %v229, 7
    %v231 = vsub.s32 1, %v230
    %v232 = vrot.slane %v52, %v231
    %233 = vset.pattern.permute.xlu0 9
    %234 = vperm.xlu0 %233, %v17
    %v235 = vpop.permute.xlu0 %234
    %237 = vset.pattern.permute.xlu0 9
    %238 = vperm.xlu0 %237, %v18
    %v239 = vpop.permute.xlu0 %238
    %v241 = vadd.f32 %v232, %v235
    %v242 = vadd.f32 %v232, %v239
    %vm243 = vcmp.gt.f32.partialorder %v241, %v225
    %vm244 = vcmp.gt.f32.partialorder %v242, %v226
    %v245 = vsel %vm243, %v241, %v225
    %v246 = vsel %vm244, %v242, %v226
    %v247 = vsel %vm243, 9, %v227
    %v248 = vsel %vm244, 9, %v228
    %s249 = smul.u32 %s46, 2
    %s250 = smul.addr %s249, 4
    %s251 = scalar_lea.vmem %s0, %s250
    %v252 = vld [vmem:[%s251] sm:$0xf]
    %v253 = vld [vmem:[%s251 + $0x4] sm:$0x1]
    %v254 = vunpack.c.l.bf16 %v252
    %v255 = vunpack.c.l.bf16 %v253
    %v256 = vadd.f32 %v245, %v254
    %v257 = vadd.f32 %v246, %v255
    %v258 = vstv %s46
    %vm259 = vcmp.lt.s32.totalorder %v258, %v19
    %v260 = vsel %vm259, 1, 0
    %v261 = vlaneseq
    %v262 = vshrl.u32 %v261, 7
    %v263 = vsub.s32 0, %v262
    %v264 = vrot.slane %v260, %v263
    %vm265 = vcmp.eq.s32.totalorder %v264, 1
    %v266 = vsel %vm265, %v256, %v51
    %v267 = vsel %vm265, %v257, %v52
    %268 = vst.msk [vmem:[#allocation2] sm:$0xff] %vm41, %v266
    %269 = vst.msk [vmem:[#allocation2 + $0x8] sm:$0x3] %vm43, %v267
    %v270 = vsel %vm265, %v247, %v21
    %v271 = vsel %vm265, %v248, %v22
    %s272 = smul.u32 %s46, 16
    %s273 = scalar_lea.vmem [#allocation3], %s272
    %274 = vst.msk [vmem:[%s273] sm:$0xff] %vm41, %v270
    %275 = vst.msk [vmem:[%s273 + $0x8] sm:$0x3] %vm43, %v271
  $region22: #{cnn_crf_forward.3} parent=0 // loop_footer
    %s50 = sadd.s32 1, %s46
  $region23: #{cnn_crf_forward.3} parent=0 // loop_footer_branch
    %45 = sbr.rel target = $region19
  $region24: #{cnn_crf_forward.3} parent=0 // loop_exit
    _
  %v276 = vld [vmem:[#allocation2] sm:$0xff]
  %v277 = vld [vmem:[#allocation2 + $0x8] sm:$0x3]
  %v279 = vrot.slane %v276, 7
  %vm281 = vcmp.gt.f32.partialorder %v276, %v279
  %v282 = vsel %vm281, %v276, %v279
  %v283 = vsel %vm281, 1, 0
  %v285 = vrot.slane %v282, 7
  %vm287 = vcmp.gt.f32.partialorder %v276, %v285
  %v288 = vsel %vm287, %v276, %v285
  %v289 = vrot.slane %v283, 7
  %v290 = vsel %vm287, 2, %v289
  %v292 = vrot.slane %v288, 7
  %vm294 = vcmp.gt.f32.partialorder %v276, %v292
  %v295 = vsel %vm294, %v276, %v292
  %v296 = vrot.slane %v290, 7
  %v297 = vsel %vm294, 3, %v296
  %v299 = vrot.slane %v295, 7
  %vm301 = vcmp.gt.f32.partialorder %v276, %v299
  %v302 = vsel %vm301, %v276, %v299
  %v303 = vrot.slane %v297, 7
  %v304 = vsel %vm301, 4, %v303
  %v306 = vrot.slane %v302, 7
  %vm308 = vcmp.gt.f32.partialorder %v276, %v306
  %v309 = vsel %vm308, %v276, %v306
  %v310 = vrot.slane %v304, 7
  %v311 = vsel %vm308, 5, %v310
  %v313 = vrot.slane %v309, 7
  %vm315 = vcmp.gt.f32.partialorder %v276, %v313
  %v316 = vsel %vm315, %v276, %v313
  %v317 = vrot.slane %v311, 7
  %v318 = vsel %vm315, 6, %v317
  %v320 = vrot.slane %v316, 7
  %vm322 = vcmp.gt.f32.partialorder %v276, %v320
  %v323 = vsel %vm322, %v276, %v320
  %v324 = vrot.slane %v318, 7
  %v325 = vsel %vm322, 7, %v324
  %v327 = vrot.slane %v323, 7
  %vm329 = vcmp.gt.f32.partialorder %v277, %v327
  %v330 = vsel %vm329, %v277, %v327
  %v331 = vrot.slane %v325, 7
  %v332 = vsel %vm329, 8, %v331
  %v334 = vrot.slane %v330, 7
  %vm336 = vcmp.gt.f32.partialorder %v277, %v334
  %v337 = vrot.slane %v332, 7
  %v338 = vsel %vm336, 9, %v337
  %s339 = scalar_lea.vmem %s4, 15
  %vm340 = vcmask 9217
  %341 = vst.msk [vmem:[%s339 - $0x1] sm:$0x2] %vm340, %v338
  loop: start=0, step=1, limit=15
  $region25: #{cnn_crf_forward.3} parent=0 // loop_pre_header
    _
  $region26: #{cnn_crf_forward.3} parent=0 // loop_header
    %s343 = sphi 0, %s347
    %p344 = scmp.ge.s32.totalorder %s343, 15
    %v348 = vphi %v338, %v380
  $region27: #{cnn_crf_forward.3} parent=0 // loop_header_branch
    %346 = sbr.rel (%p344) target = $region31
  $region28: #{cnn_crf_forward.3} parent=0 // loop_body
    %s349 = ssub.s32 14, %s343
    %s350 = ssub.s32 15, %s343
    %s351 = smul.u32 %s350, 16
    %s352 = scalar_lea.vmem [#allocation3], %s351
    %v353 = vld [vmem:[%s352] sm:$0xff]
    %v354 = vld [vmem:[%s352 + $0x8] sm:$0x3]
    %vm355 = vcmp.eq.s32.totalorder %v348, 1
    %v356 = vrot.slane %v353, 7
    %v357 = vsel %vm355, %v353, %v356
    %vm358 = vcmp.eq.s32.totalorder %v348, 2
    %v359 = vrot.slane %v353, 1
    %v360 = vsel %vm358, %v359, %v357
    %vm361 = vcmp.eq.s32.totalorder %v348, 3
    %v362 = vrot.slane %v353, 2
    %v363 = vsel %vm361, %v362, %v360
    %vm364 = vcmp.eq.s32.totalorder %v348, 4
    %v365 = vrot.slane %v353, 3
    %v366 = vsel %vm364, %v365, %v363
    %vm367 = vcmp.eq.s32.totalorder %v348, 5
    %v368 = vrot.slane %v353, 4
    %v369 = vsel %vm367, %v368, %v366
    %vm370 = vcmp.eq.s32.totalorder %v348, 6
    %v371 = vrot.slane %v353, 5
    %v372 = vsel %vm370, %v371, %v369
    %vm373 = vcmp.eq.s32.totalorder %v348, 7
    %v374 = vrot.slane %v353, 6
    %v375 = vsel %vm373, %v374, %v372
    %vm376 = vcmp.eq.s32.totalorder %v348, 8
    %v377 = vrot.slane %v354, 7
    %v378 = vsel %vm376, %v377, %v375
    %vm379 = vcmp.eq.s32.totalorder %v348, 9
    %v380 = vsel %vm379, %v354, %v378
    %s381 = scalar_lea.vmem %s4, %s349
    %382 = vst.msk [vmem:[%s381 - $0x1] sm:$0x2] %vm340, %v380
  $region29: #{cnn_crf_forward.3} parent=0 // loop_footer
    %s347 = sadd.s32 1, %s343
  $region30: #{cnn_crf_forward.3} parent=0 // loop_footer_branch
    %342 = sbr.rel target = $region26
  $region31: #{cnn_crf_forward.3} parent=0 // loop_exit
    _
  // Predicated region
  $region32: #{cnn_crf_forward.3} parent=0 // pred_check
    _
  $region33: #{cnn_crf_forward.3} parent=0 // pred_check_branch
    %384 = sbr.rel (0) target = $region35
  $region34: #{cnn_crf_forward.3} parent=0 // pred_region
    _
  $region35: #{cnn_crf_forward.3} parent=0 // pred_fallthru
    _
  // Predicated region
  $region36: #{cnn_crf_forward.3} parent=0 // pred_check
    _
  $region37: #{cnn_crf_forward.3} parent=0 // pred_check_branch
    %386 = sbr.rel (0) target = $region39
  $region38: #{cnn_crf_forward.3} parent=0 // pred_region
    _
  $region39: #{cnn_crf_forward.3} parent=0 // pred_fallthru
    _

// kernel: cnn_crf_forward.2
$region0: #{cnn_crf_forward.2}
  #allocation0 [shape = 'u32[]', space=smem, size = 0x4, offset = 0x4, fixed_abs, tag = 'smem constant byte address 0x4 - core index']
  #allocation1 [shape = 'u32[144,128]{1,0:T(1,128)}', space=vmem, size = 0x12000, scoped, tag = 'internal scratch']
  #allocation2 [shape = 'bf16[20,12]{1,0:T(8,128)(2,1)}', space=vmem, size = 0x1800, scoped, tag = 'scratch operand']
  #allocation3 [shape = 'bf16[20,48]{1,0:T(8,128)(2,1)}', space=vmem, size = 0x1800, scoped, tag = 'scratch operand']
  #allocation4 [shape = 's32[1]{0}', space=sflag, size = 0x4, scoped, tag = 'scoped memory for cnn_crf_forward.2']
  #allocation5 [shape = 'u8[512]{0}', space=smem, size = 0x200, scoped, tag = 'prefetched SMEM operand 0']
  %s0 = inlined_call_operand.vmem [shape: s32[2], index: 0, kind: input, shape index: {}]
  %s1 = inlined_call_operand.vmem [shape: bf16[2,16,12], index: 1, kind: input, shape index: {}]
  %s2 = inlined_call_operand.vmem [shape: bf16[60,48], index: 2, kind: input, shape index: {}]
  %s3 = inlined_call_operand.vmem [shape: f32[1,48], index: 3, kind: input, shape index: {}]
  %s4 = inlined_call_operand.vmem [shape: bf16[240,48], index: 4, kind: input, shape index: {}]
  %s5 = inlined_call_operand.vmem [shape: f32[1,48], index: 5, kind: input, shape index: {}]
  %s6 = inlined_call_operand.vmem [shape: bf16[48,128], index: 6, kind: input, shape index: {}]
  %s7 = inlined_call_operand.vmem [shape: f32[1,128], index: 7, kind: input, shape index: {}]
  %s8 = inlined_call_operand.vmem [shape: bf16[2,16,128], index: 8, kind: output, shape index: {}]
  %s9 = sld [smem:[#allocation0]]
  $region61: #{cnn_crf_forward.2} parent=0
    _
  %s11 = ssub.s32 1, %s9
  %s12 = scalar_select 0, %s11, %s9
  %s13 = sshll.u32 %s0, 4
  %s14 = int_to_ptr.vmem [resolvable:$true] %s13
  %16 = dma.vmem_to_smem %s14, 16, [#allocation5], [#allocation4]
  %17 = dma.done [#allocation4], 16
  %18 = sfence
  loop: start=0, step=1, limit=4
  $region2: #{cnn_crf_forward.2} parent=0 // loop_pre_header
    _
  $region3: #{cnn_crf_forward.2} parent=0 // loop_header
    %s20 = sphi 0, %s24
    %p21 = scmp.ge.s32.totalorder %s20, 4
    %s30 = sphi 0, %s32
    %s33 = sphi 0, %s30
    %s34 = sphi 0, %s33
    %s50 = sphi 0, %s34
    %s54 = sphi 0, %s54
    %s56 = sphi 0, %s54
    %s57 = sphi 0, %s56
    %s71 = sphi 0, %s57
    %s75 = sphi 0, %s75
    %s77 = sphi 0, %s75
    %s78 = sphi 0, %s77
    %s92 = sphi 0, %s78
    %s96 = sphi 0, %s96
    %s98 = sphi 0, %s96
    %s99 = sphi 0, %s98
    %s113 = sphi 0, %s99
    %s117 = sphi 0, %s117
    %s119 = sphi 0, %s117
    %s120 = sphi 0, %s119
    %s134 = sphi 0, %s120
    %s138 = sphi 0, %s138
    %s140 = sphi 0, %s138
    %s141 = sphi 0, %s140
    %s155 = sphi 0, %s141
    %s159 = sphi 0, %s159
    %s161 = sphi 0, %s159
    %s162 = sphi 0, %s161
    %s176 = sphi 0, %s162
    %s182 = sphi 0, %s184
    %s185 = sphi 0, %s182
    %s186 = sphi 0, %s185
    %s202 = sphi 0, %s186
  $region4: #{cnn_crf_forward.2} parent=0 // loop_header_branch
    %23 = sbr.rel (%p21) target = $region8
  $region5: #{cnn_crf_forward.2} parent=0 // loop_body
    %s25 = ssub.s32 %s20, 1
    %s26 = ssub.s32 %s20, 2
    %s27 = sadd.s32 %s20, 1
    %s28 = ssub.s32 %s20, %s27
    %p29 = scmp.eq.s32.totalorder %s28, 0
    %s31 = sadd.s32 %s30, 1
    %s32 = scalar_select %p29, %s30, %s31
    %p35 = pneg %p29
    %p36 = scmp.eq.s32.totalorder %s20, 1
    %p37 = por %p35, %p36
    %p38 = scmp.ne.s32.totalorder %s30, %s33
    %p39 = scmp.eq.s32.totalorder %s20, 0
    %p40 = por %p38, %p39
    %p41 = scmp.ne.s32.totalorder %s30, %s33
    %p42 = scmp.eq.s32.totalorder %s25, 1
    %p43 = por %p41, %p42
    %p44 = scmp.ne.s32.totalorder %s33, %s34
    %p45 = scmp.eq.s32.totalorder %s25, 0
    %p46 = por %p44, %p45
    %p47 = scmp.ne.s32.totalorder %s33, %s34
    %p48 = scmp.eq.s32.totalorder %s26, 1
    %p49 = por %p47, %p48
    %p51 = scmp.ne.s32.totalorder %s34, %s50
    %p52 = scmp.eq.s32.totalorder %s26, 0
    %p53 = por %p51, %p52
    %s55 = sadd.s32 %s54, 1
    %p58 = scmp.eq.s32.totalorder %s20, 1
    %p59 = scmp.ne.s32.totalorder %s54, %s56
    %p60 = scmp.eq.s32.totalorder %s20, 0
    %p61 = por %p59, %p60
    %p62 = scmp.ne.s32.totalorder %s54, %s56
    %p63 = scmp.eq.s32.totalorder %s25, 1
    %p64 = por %p62, %p63
    %p65 = scmp.ne.s32.totalorder %s56, %s57
    %p66 = scmp.eq.s32.totalorder %s25, 0
    %p67 = por %p65, %p66
    %p68 = scmp.ne.s32.totalorder %s56, %s57
    %p69 = scmp.eq.s32.totalorder %s26, 1
    %p70 = por %p68, %p69
    %p72 = scmp.ne.s32.totalorder %s57, %s71
    %p73 = scmp.eq.s32.totalorder %s26, 0
    %p74 = por %p72, %p73
    %s76 = sadd.s32 %s75, 1
    %p79 = scmp.eq.s32.totalorder %s20, 1
    %p80 = scmp.ne.s32.totalorder %s75, %s77
    %p81 = scmp.eq.s32.totalorder %s20, 0
    %p82 = por %p80, %p81
    %p83 = scmp.ne.s32.totalorder %s75, %s77
    %p84 = scmp.eq.s32.totalorder %s25, 1
    %p85 = por %p83, %p84
    %p86 = scmp.ne.s32.totalorder %s77, %s78
    %p87 = scmp.eq.s32.totalorder %s25, 0
    %p88 = por %p86, %p87
    %p89 = scmp.ne.s32.totalorder %s77, %s78
    %p90 = scmp.eq.s32.totalorder %s26, 1
    %p91 = por %p89, %p90
    %p93 = scmp.ne.s32.totalorder %s78, %s92
    %p94 = scmp.eq.s32.totalorder %s26, 0
    %p95 = por %p93, %p94
    %s97 = sadd.s32 %s96, 1
    %p100 = scmp.eq.s32.totalorder %s20, 1
    %p101 = scmp.ne.s32.totalorder %s96, %s98
    %p102 = scmp.eq.s32.totalorder %s20, 0
    %p103 = por %p101, %p102
    %p104 = scmp.ne.s32.totalorder %s96, %s98
    %p105 = scmp.eq.s32.totalorder %s25, 1
    %p106 = por %p104, %p105
    %p107 = scmp.ne.s32.totalorder %s98, %s99
    %p108 = scmp.eq.s32.totalorder %s25, 0
    %p109 = por %p107, %p108
    %p110 = scmp.ne.s32.totalorder %s98, %s99
    %p111 = scmp.eq.s32.totalorder %s26, 1
    %p112 = por %p110, %p111
    %p114 = scmp.ne.s32.totalorder %s99, %s113
    %p115 = scmp.eq.s32.totalorder %s26, 0
    %p116 = por %p114, %p115
    %s118 = sadd.s32 %s117, 1
    %p121 = scmp.eq.s32.totalorder %s20, 1
    %p122 = scmp.ne.s32.totalorder %s117, %s119
    %p123 = scmp.eq.s32.totalorder %s20, 0
    %p124 = por %p122, %p123
    %p125 = scmp.ne.s32.totalorder %s117, %s119
    %p126 = scmp.eq.s32.totalorder %s25, 1
    %p127 = por %p125, %p126
    %p128 = scmp.ne.s32.totalorder %s119, %s120
    %p129 = scmp.eq.s32.totalorder %s25, 0
    %p130 = por %p128, %p129
    %p131 = scmp.ne.s32.totalorder %s119, %s120
    %p132 = scmp.eq.s32.totalorder %s26, 1
    %p133 = por %p131, %p132
    %p135 = scmp.ne.s32.totalorder %s120, %s134
    %p136 = scmp.eq.s32.totalorder %s26, 0
    %p137 = por %p135, %p136
    %s139 = sadd.s32 %s138, 1
    %p142 = scmp.eq.s32.totalorder %s20, 1
    %p143 = scmp.ne.s32.totalorder %s138, %s140
    %p144 = scmp.eq.s32.totalorder %s20, 0
    %p145 = por %p143, %p144
    %p146 = scmp.ne.s32.totalorder %s138, %s140
    %p147 = scmp.eq.s32.totalorder %s25, 1
    %p148 = por %p146, %p147
    %p149 = scmp.ne.s32.totalorder %s140, %s141
    %p150 = scmp.eq.s32.totalorder %s25, 0
    %p151 = por %p149, %p150
    %p152 = scmp.ne.s32.totalorder %s140, %s141
    %p153 = scmp.eq.s32.totalorder %s26, 1
    %p154 = por %p152, %p153
    %p156 = scmp.ne.s32.totalorder %s141, %s155
    %p157 = scmp.eq.s32.totalorder %s26, 0
    %p158 = por %p156, %p157
    %s160 = sadd.s32 %s159, 1
    %p163 = scmp.eq.s32.totalorder %s20, 1
    %p164 = scmp.ne.s32.totalorder %s159, %s161
    %p165 = scmp.eq.s32.totalorder %s20, 0
    %p166 = por %p164, %p165
    %p167 = scmp.ne.s32.totalorder %s159, %s161
    %p168 = scmp.eq.s32.totalorder %s25, 1
    %p169 = por %p167, %p168
    %p170 = scmp.ne.s32.totalorder %s161, %s162
    %p171 = scmp.eq.s32.totalorder %s25, 0
    %p172 = por %p170, %p171
    %p173 = scmp.ne.s32.totalorder %s161, %s162
    %p174 = scmp.eq.s32.totalorder %s26, 1
    %p175 = por %p173, %p174
    %p177 = scmp.ne.s32.totalorder %s162, %s176
    %p178 = scmp.eq.s32.totalorder %s26, 0
    %p179 = por %p177, %p178
    %s180 = ssub.s32 %s20, %s27
    %p181 = scmp.eq.s32.totalorder %s180, 0
    %s183 = sadd.s32 %s182, 1
    %s184 = scalar_select %p181, %s182, %s183
    %p187 = pneg %p181
    %p188 = scmp.eq.s32.totalorder %s20, 1
    %p189 = por %p187, %p188
    %p190 = scmp.ne.s32.totalorder %s182, %s185
    %p191 = scmp.eq.s32.totalorder %s20, 0
    %p192 = por %p190, %p191
    %p193 = scmp.ne.s32.totalorder %s182, %s185
    %p194 = scmp.eq.s32.totalorder %s25, 1
    %p195 = por %p193, %p194
    %p196 = scmp.ne.s32.totalorder %s185, %s186
    %p197 = scmp.eq.s32.totalorder %s25, 0
    %p198 = por %p196, %p197
    %p199 = scmp.ne.s32.totalorder %s185, %s186
    %p200 = scmp.eq.s32.totalorder %s26, 1
    %p201 = por %p199, %p200
    %p203 = scmp.ne.s32.totalorder %s186, %s202
    %p204 = scmp.eq.s32.totalorder %s26, 0
    %p205 = por %p203, %p204
    %p206 = scmp.le.s32.totalorder 1, %s20
    %p207 = scmp.lt.s32.totalorder %s20, 3
    %p208 = pnand %p206, %p207
    %p209 = pneg %p208
    // Predicated region
    $region9: #{cnn_crf_forward.2} parent=5 // pred_check
      _
    $region10: #{cnn_crf_forward.2} parent=5 // pred_check_branch
      %211 = sbr.rel (%p208) target = $region12
    $region11: #{cnn_crf_forward.2} parent=5 // pred_region
      %s212 = ssub.s32 %s20, 1
      // Predicated region
      $region13: #{cnn_crf_forward.2} parent=11 // pred_check
        %p213 = pneg %p67
      $region14: #{cnn_crf_forward.2} parent=11 // pred_check_branch
        %215 = sbr.rel (%p213) target = $region16
      $region15: #{cnn_crf_forward.2} parent=11 // pred_region
        _
      $region16: #{cnn_crf_forward.2} parent=11 // pred_fallthru
        _
      // Predicated region
      $region17: #{cnn_crf_forward.2} parent=11 // pred_check
        %p216 = pneg %p88
      $region18: #{cnn_crf_forward.2} parent=11 // pred_check_branch
        %218 = sbr.rel (%p216) target = $region20
      $region19: #{cnn_crf_forward.2} parent=11 // pred_region
        _
      $region20: #{cnn_crf_forward.2} parent=11 // pred_fallthru
        _
      // Predicated region
      $region21: #{cnn_crf_forward.2} parent=11 // pred_check
        %p219 = pneg %p109
      $region22: #{cnn_crf_forward.2} parent=11 // pred_check_branch
        %221 = sbr.rel (%p219) target = $region24
      $region23: #{cnn_crf_forward.2} parent=11 // pred_region
        _
      $region24: #{cnn_crf_forward.2} parent=11 // pred_fallthru
        _
      // Predicated region
      $region25: #{cnn_crf_forward.2} parent=11 // pred_check
        %p222 = pneg %p130
      $region26: #{cnn_crf_forward.2} parent=11 // pred_check_branch
        %224 = sbr.rel (%p222) target = $region28
      $region27: #{cnn_crf_forward.2} parent=11 // pred_region
        _
      $region28: #{cnn_crf_forward.2} parent=11 // pred_fallthru
        _
      // Predicated region
      $region29: #{cnn_crf_forward.2} parent=11 // pred_check
        %p225 = pneg %p151
      $region30: #{cnn_crf_forward.2} parent=11 // pred_check_branch
        %227 = sbr.rel (%p225) target = $region32
      $region31: #{cnn_crf_forward.2} parent=11 // pred_region
        _
      $region32: #{cnn_crf_forward.2} parent=11 // pred_fallthru
        _
      // Predicated region
      $region33: #{cnn_crf_forward.2} parent=11 // pred_check
        %p228 = pneg %p172
      $region34: #{cnn_crf_forward.2} parent=11 // pred_check_branch
        %230 = sbr.rel (%p228) target = $region36
      $region35: #{cnn_crf_forward.2} parent=11 // pred_region
        _
      $region36: #{cnn_crf_forward.2} parent=11 // pred_fallthru
        _
    $region12: #{cnn_crf_forward.2} parent=5 // pred_fallthru
      _
    %p231 = scmp.lt.s32.totalorder %s20, 2
    // Predicated region
    $region37: #{cnn_crf_forward.2} parent=5 // pred_check
      %p232 = pneg %p231
    $region38: #{cnn_crf_forward.2} parent=5 // pred_check_branch
      %234 = sbr.rel (%p232) target = $region40
    $region39: #{cnn_crf_forward.2} parent=5 // pred_region
      // Predicated region
      $region41: #{cnn_crf_forward.2} parent=39 // pred_check
        %p235 = pneg %p40
      $region42: #{cnn_crf_forward.2} parent=39 // pred_check_branch
        %237 = sbr.rel (%p235) target = $region44
      $region43: #{cnn_crf_forward.2} parent=39 // pred_region
        %p238 = scmp.lt.s32.totalorder %s20, 1
        %s239 = scalar_select %p238, %s20, 1
        %s240 = smul.addr %s239, 2
        %s241 = smul.addr %s240, 4
        %s242 = scalar_lea.vmem %s1, %s241
      $region44: #{cnn_crf_forward.2} parent=39 // pred_fallthru
        _
    $region40: #{cnn_crf_forward.2} parent=5 // pred_fallthru
      _
    %p243 = scmp.le.s32.totalorder 1, %s20
    %p244 = scmp.lt.s32.totalorder %s20, 3
    %p245 = pnand %p243, %p244
    %p246 = pneg %p245
    // Predicated region
    $region45: #{cnn_crf_forward.2} parent=5 // pred_check
      _
    $region46: #{cnn_crf_forward.2} parent=5 // pred_check_branch
      %248 = sbr.rel (%p245) target = $region48
    $region47: #{cnn_crf_forward.2} parent=5 // pred_region
      %s249 = ssub.s32 %s20, 1
      %p250 = scmp.lt.s32.totalorder %s25, 1
      %s251 = scalar_select %p250, %s25, 1
      %s252 = smul.addr %s251, 2
      %s253 = smul.addr %s252, 4
      %s254 = scalar_lea.vmem %s1, %s253
      %p255 = pneg %p46
      %p256 = pneg %p43
      %p257 = pneg %p67
      %p258 = pneg %p64
      %p259 = pneg %p88
      %p260 = pneg %p85
      %p261 = pneg %p109
      %p262 = pneg %p106
      %p263 = pneg %p130
      %p264 = pneg %p127
      %p265 = pneg %p151
      %p266 = pneg %p148
      %p267 = pneg %p172
      %p268 = pneg %p169
      %p269 = pneg %p198
      %p270 = pneg %p195
      %p271 = scmp.lt.s32.totalorder %s25, 1
      %s272 = scalar_select %p271, %s25, 1
      %s273 = smul.addr %s272, 2
      %s274 = smul.addr %s273, 4
      %s275 = scalar_lea.vmem %s8, %s274
      %p276 = scmp.lt.s32.totalorder %s25, 1
      %s277 = scalar_select %p276, %s25, 1
      %s278 = smul.addr %s277, 2
      %s279 = smul.addr %s278, 4
      %s280 = scalar_lea.vmem %s1, %s279
      %p281 = scmp.lt.s32.totalorder %s25, 1
      %s282 = scalar_select %p281, %s25, 1
      %s283 = smul.addr %s282, 2
      %s284 = smul.addr %s283, 4
      %s285 = scalar_lea.vmem %s8, %s284
      %vm287 = vcmask 93184
      %288 = vst.msk [vmem:[#allocation2] sm:$0xf] %vm287, 0
      %289 = vst.msk [vmem:[#allocation2 + $0x4] sm:$0xf] %vm287, 0
      %vm290 = vcmask 91136
      %291 = vst.msk [vmem:[#allocation2 + $0x8] sm:$0x3] %vm290, 0
      %v292 = vld [vmem:[%s280] sm:$0xf]
      %v293 = vld [vmem:[%s280 + $0x4] sm:$0xf]
      %vm296 = vcmask 1040384
      %vm297 = vcmask 1044484
      %vm298 = vmor %vm296, %vm297
      %v299 = vrot.slane %v292, 7
      %v300 = vrot.slane %v299, 4
      %v301 = vrot.slane %v293, 7
      %v302 = vsel %vm298, %v300, %v301
      %v303 = vrot.slane %v301, 4
      %vm307 = vcmask 93185
      %308 = vst.msk [vmem:[#allocation2] sm:$0xe] %vm307, %v299
      %309 = vst.msk [vmem:[#allocation2 + $0x4] sm:$0xf] %vm287, %v302
      %vm310 = vcmask 90112
      %311 = vst.msk [vmem:[#allocation2 + $0x8] sm:$0x1] %vm310, %v303
      %v312 = vld [vmem:[#allocation2] sm:$0xf]
      %v313 = vld [vmem:[#allocation2 + $0x4] sm:$0xf]
      %v314 = vld [vmem:[#allocation2 + $0x8] sm:$0x1]
      %v315 = vld [vmem:[#allocation2] sm:$0xe]
      %v316 = vld [vmem:[#allocation2 + $0x8] sm:$0x3]
      %v317 = vld [vmem:[#allocation2] sm:$0xc]
      %v320 = vunpack.c.l.b16 %v312
      %v321 = vunpack.c.l.b16 %v313
      %v322 = vpack.c.b16 %v321, %v320
      %v324 = vunpack.c.l.b16 %v314
      %v325 = vpack.c.b16 %v324, %v324
      %vm326 = vsmask.f32 7424
      %v328 = vshrl.u32 %v322, 16
      %v330 = vshll.u32 %v322, 16
      %v332 = vrot.slane %v330, 1
      %v333 = vor.u32 %v328, %v332
      %v335 = vshll.u32 %v325, 16
      %v337 = vrot.slane %v335, 1
      %v338 = vsel %vm326, %v333, %v337
      %339 = vrot.lane.b32.xlu0 %v338, 12
      %v340 = vpop.permute.xlu0 %339
      %v342 = vunpack.c.l.b16 %v315
      %v343 = vpack.c.b16 %v321, %v342
      %vm344 = vcmask 1046528
      %v345 = vrot.slane %v343, 1
      %v346 = vrot.slane %v325, 1
      %v347 = vsel %vm344, %v345, %v346
      %348 = vrot.lane.b32.xlu0 %v347, 24
      %v349 = vpop.permute.xlu0 %348
      %v351 = vunpack.c.l.b16 %v316
      %v352 = vpack.c.b16 %v351, %v351
      %vm353 = vsmask.f32 6400
      %v355 = vshrl.u32 %v343, 16
      %v357 = vrot.slane %v355, 1
      %v358 = vshll.u32 %v343, 16
      %v360 = vrot.slane %v358, 2
      %v361 = vor.u32 %v357, %v360
      %v363 = vshrl.u32 %v352, 16
      %v365 = vrot.slane %v363, 1
      %v366 = vshll.u32 %v352, 16
      %v368 = vrot.slane %v366, 2
      %v369 = vor.u32 %v365, %v368
      %v370 = vsel %vm353, %v361, %v369
      %371 = vrot.lane.b32.xlu0 %v370, 36
      %v372 = vpop.permute.xlu0 %371
      %v374 = vunpack.c.l.b16 %v317
      %v375 = vpack.c.b16 %v321, %v374
      %vm376 = vcmask 1045504
      %v377 = vrot.slane %v375, 2
      %v378 = vrot.slane %v352, 2
      %v379 = vsel %vm376, %v377, %v378
      %380 = vrot.lane.b32.xlu0 %v379, 48
      %v381 = vpop.permute.xlu0 %380
      %vm382 = vcmask 97280
      %v384 = vsel %vm382, %v322, %v340
      %vm385 = vcmask 195584
      %v387 = vsel %vm385, %v384, %v349
      %vm388 = vcmask 293888
      %v390 = vsel %vm388, %v387, %v372
      %vm391 = vcmask 392192
      %v393 = vsel %vm391, %v390, %v381
      %v394 = vld [vmem:[%s2] sm:$0xf]
      %v395 = vld [vmem:[%s2 + $0x4] sm:$0xf]
      %v396 = vld [vmem:[%s2 + $0x8] sm:$0xf]
      %v397 = vld [vmem:[%s2 + $0xc] sm:$0xf]
      %v398 = vld [vmem:[%s2 + $0x10] sm:$0xf]
      %v399 = vld [vmem:[%s2 + $0x14] sm:$0xf]
      %v400 = vld [vmem:[%s2 + $0x18] sm:$0xf]
      %v401 = vld [vmem:[%s2 + $0x1c] sm:$0x3]
      %v402 = vld [vmem:[%s3] sm:$0x1]
      %v404 = vlaneseq
      %v405 = vshrl.u32 %v404, 7
      %v406 = vsub.s32 0, %v405
      %v407 = vrot.slane %v402, %v406
      %v417 = vunpack.c.l.b16 %v394
      %v418 = vunpack.c.l.b16 %v395
      %v419 = vunpack.c.l.b16 %v396
      %v420 = vunpack.c.l.b16 %v397
      %v421 = vunpack.c.l.b16 %v398
      %v422 = vunpack.c.l.b16 %v399
      %v423 = vunpack.c.l.b16 %v400
      %v424 = vunpack.c.l.b16 %v401
      %v425 = vpack.c.b16 %v418, %v417
      %v426 = vpack.c.b16 %v420, %v419
      %v427 = vpack.c.b16 %v422, %v421
      %v428 = vpack.c.b16 %v424, %v423
      %vm432 = vcmask 490496
      %v433 = vsel %vm432, %v393, 0
      %vm435 = vcmask 1045504
      %v437 = vsel %vm435, %v428, 0
      %439 = vmatprep.subr.bf16.mxu0 0
      %440 = vmatpush1.bf16.msra.mxu0 %v425
      %441 = vmatprep.subr.bf16.mxu0 0
      %442 = vmatpush1.bf16.msra.mxu0 %v426
      %443 = vmatprep.subr.bf16.mxu0 0
      %444 = vmatpush1.bf16.msra.mxu0 %v427
      %445 = vmatprep.subr.bf16.mxu0 0
      %446 = vmatpush1.bf16.msra.mxu0 %v437
      %447 = vmatprep.subr.bf16.mxu0 0
      %448 = vmatpush1.bf16.msra.mxu0 0
      %449 = vmatprep.subr.bf16.mxu0 0
      %450 = vmatpush1.bf16.msra.mxu0 0
      %451 = vmatprep.subr.bf16.mxu0 0
      %452 = vmatpush1.bf16.msra.mxu0 0
      %453 = vmatprep.subr.bf16.mxu0 0
      %454 = vmatpush1.bf16.msra.mxu0 0
      %455 = vmatprep.subr.bf16.mxu0 0
      %456 = vmatpush1.bf16.msra.mxu0 0
      %457 = vmatprep.subr.bf16.mxu0 0
      %458 = vmatpush1.bf16.msra.mxu0 0
      %459 = vmatprep.subr.bf16.mxu0 0
      %460 = vmatpush1.bf16.msra.mxu0 0
      %461 = vmatprep.subr.bf16.mxu0 0
      %462 = vmatpush1.bf16.msra.mxu0 0
      %463 = vmatprep.subr.bf16.mxu0 0
      %464 = vmatpush1.bf16.msra.mxu0 0
      %465 = vmatprep.subr.bf16.mxu0 0
      %466 = vmatpush1.bf16.msra.mxu0 0
      %467 = vmatprep.subr.bf16.mxu0 0
      %468 = vmatpush1.bf16.msra.mxu0 0
      %469 = vmatprep.subr.bf16.mxu0 0
      %470 = vmatpush1.bf16.msra.mxu0 0
      %471 = vmatprep.mubr.bf16.mxu0 0
      %472 = vmatmul.mubr.bf16.gmra.mrb[0].mxu0 %v433
      %v473 = vpop.f32.mrb[0].mxu0
      %v474 = vadd.f32 %v407, %v473
      %v475 = vpop.f32.mrb[0].mxu0
      %v476 = vpop.f32.mrb[0].mxu0
      %v477 = vadd.f32 %v407, %v476
      %v478 = vpop.f32.mrb[0].mxu0
      %479 = vdwg.mxu0
      %v480 = vmax.f32 %v474, 0.0
      %v481 = vmax.f32 %v477, 0.0
      %vm482 = vcmask 388096
      %483 = vst.msk [vmem:[#allocation3] sm:$0xf] %vm482, 0
      %484 = vst.msk [vmem:[#allocation3 + $0x4] sm:$0xf] %vm482, 0
      %vm485 = vcmask 386048
      %486 = vst.msk [vmem:[#allocation3 + $0x8] sm:$0x3] %vm485, 0
      %v487 = vpack.c.bf16 %v481, %v480
      %v489 = vunpack.c.l.b16 %v487
      %v490 = vunpack.c.h.b16 %v487
      %v491 = vpack.c.b16 %v489, %v489
      %v492 = vpack.c.b16 %v490, %v490
      %v493 = vrot.slane %v491, 7
      %v494 = vrot.slane %v493, 4
      %v495 = vrot.slane %v492, 7
      %v496 = vsel %vm298, %v494, %v495
      %v497 = vrot.slane %v495, 4
      %vm501 = vcmask 388097
      %502 = vst.msk [vmem:[#allocation3] sm:$0xe] %vm501, %v493
      %503 = vst.msk [vmem:[#allocation3 + $0x4] sm:$0xf] %vm482, %v496
      %vm504 = vcmask 385024
      %505 = vst.msk [vmem:[#allocation3 + $0x8] sm:$0x1] %vm504, %v497
      %v506 = vld [vmem:[#allocation3] sm:$0xf]
      %v507 = vld [vmem:[#allocation3 + $0x4] sm:$0xf]
      %v508 = vld [vmem:[#allocation3 + $0x8] sm:$0x1]
      %v509 = vld [vmem:[#allocation3] sm:$0xe]
      %v510 = vld [vmem:[#allocation3 + $0x8] sm:$0x3]
      %v511 = vld [vmem:[#allocation3] sm:$0xc]
      %v514 = vunpack.c.l.b16 %v506
      %v515 = vunpack.c.l.b16 %v507
      %v516 = vpack.c.b16 %v515, %v514
      %v518 = vunpack.c.l.b16 %v508
      %v519 = vpack.c.b16 %v518, %v518
      %v521 = vshrl.u32 %v516, 16
      %v523 = vshll.u32 %v516, 16
      %v525 = vrot.slane %v523, 1
      %v526 = vor.u32 %v521, %v525
      %v528 = vshll.u32 %v519, 16
      %v530 = vrot.slane %v528, 1
      %v531 = vsel %vm326, %v526, %v530
      %532 = vrot.lane.b32.xlu0 %v531, 48
      %v533 = vpop.permute.xlu0 %532
      %v535 = vunpack.c.l.b16 %v509
      %v536 = vpack.c.b16 %v515, %v535
      %v537 = vrot.slane %v536, 1
      %v538 = vrot.slane %v519, 1
      %v539 = vsel %vm344, %v537, %v538
      %540 = vrot.lane.b32.xlu0 %v539, 96
      %v541 = vpop.permute.xlu0 %540
      %v543 = vunpack.c.l.b16 %v510
      %v544 = vpack.c.b16 %v543, %v543
      %v546 = vshrl.u32 %v536, 16
      %v548 = vrot.slane %v546, 1
      %v549 = vshll.u32 %v536, 16
      %v551 = vrot.slane %v549, 2
      %v552 = vor.u32 %v548, %v551
      %v554 = vshrl.u32 %v544, 16
      %v556 = vrot.slane %v554, 1
      %v557 = vshll.u32 %v544, 16
      %v559 = vrot.slane %v557, 2
      %v560 = vor.u32 %v556, %v559
      %v561 = vsel %vm353, %v552, %v560
      %562 = vrot.lane.b32.xlu0 %v561, 16
      %v563 = vpop.permute.xlu0 %562
      %v565 = vunpack.c.l.b16 %v511
      %v566 = vpack.c.b16 %v515, %v565
      %v567 = vrot.slane %v566, 2
      %v568 = vrot.slane %v544, 2
      %v569 = vsel %vm376, %v567, %v568
      %570 = vrot.lane.b32.xlu0 %v569, 64
      %v571 = vpop.permute.xlu0 %570
      %v573 = vsel %vm391, %v516, %v533
      %vm574 = vcmask 785408
      %v576 = vsel %vm574, %v573, %v541
      %vm578 = vcmask 130048
      %v580 = vsel %vm578, %v541, %v563
      %vm581 = vcmask 523264
      %v583 = vsel %vm581, %v580, %v571
      %v584 = vld [vmem:[%s4] sm:$0xf]
      %v585 = vld [vmem:[%s4 + $0x4] sm:$0xf]
      %v586 = vld [vmem:[%s4 + $0x8] sm:$0xf]
      %v587 = vld [vmem:[%s4 + $0xc] sm:$0xf]
      %v588 = vld [vmem:[%s4 + $0x10] sm:$0xf]
      %v589 = vld [vmem:[%s4 + $0x14] sm:$0xf]
      %v590 = vld [vmem:[%s4 + $0x18] sm:$0xf]
      %v591 = vld [vmem:[%s4 + $0x1c] sm:$0xf]
      %v592 = vld [vmem:[%s4 + $0x20] sm:$0xf]
      %v593 = vld [vmem:[%s4 + $0x24] sm:$0xf]
      %v594 = vld [vmem:[%s4 + $0x28] sm:$0xf]
      %v595 = vld [vmem:[%s4 + $0x2c] sm:$0xf]
      %v596 = vld [vmem:[%s4 + $0x30] sm:$0xf]
      %v597 = vld [vmem:[%s4 + $0x34] sm:$0xf]
      %v598 = vld [vmem:[%s4 + $0x38] sm:$0xf]
      %v599 = vld [vmem:[%s4 + $0x3c] sm:$0xf]
      %v600 = vld [vmem:[%s4 + $0x40] sm:$0xf]
      %v601 = vld [vmem:[%s4 + $0x44] sm:$0xf]
      %v602 = vld [vmem:[%s4 + $0x48] sm:$0xf]
      %v603 = vld [vmem:[%s4 + $0x4c] sm:$0xf]
      %v604 = vld [vmem:[%s4 + $0x50] sm:$0xf]
      %v605 = vld [vmem:[%s4 + $0x54] sm:$0xf]
      %v606 = vld [vmem:[%s4 + $0x58] sm:$0xf]
      %v607 = vld [vmem:[%s4 + $0x5c] sm:$0xf]
      %v608 = vld [vmem:[%s4 + $0x60] sm:$0xf]
      %v609 = vld [vmem:[%s4 + $0x64] sm:$0xf]
      %v610 = vld [vmem:[%s4 + $0x68] sm:$0xf]
      %v611 = vld [vmem:[%s4 + $0x6c] sm:$0xf]
      %v612 = vld [vmem:[%s4 + $0x70] sm:$0xf]
      %v613 = vld [vmem:[%s4 + $0x74] sm:$0xf]
      %v614 = vld [vmem:[%s5] sm:$0x1]
      %v616 = vlaneseq
      %v617 = vshrl.u32 %v616, 7
      %v618 = vsub.s32 0, %v617
      %v619 = vrot.slane %v614, %v618
      %v651 = vunpack.c.l.b16 %v584
      %v652 = vunpack.c.l.b16 %v585
      %v653 = vunpack.c.l.b16 %v586
      %v654 = vunpack.c.l.b16 %v587
      %v655 = vunpack.c.l.b16 %v588
      %v656 = vunpack.c.l.b16 %v589
      %v657 = vunpack.c.l.b16 %v590
      %v658 = vunpack.c.l.b16 %v591
      %v659 = vunpack.c.l.b16 %v592
      %v660 = vunpack.c.l.b16 %v593
      %v661 = vunpack.c.l.b16 %v594
      %v662 = vunpack.c.l.b16 %v595
      %v663 = vunpack.c.l.b16 %v596
      %v664 = vunpack.c.l.b16 %v597
      %v665 = vunpack.c.l.b16 %v598
      %v666 = vunpack.c.l.b16 %v599
      %v667 = vunpack.c.l.b16 %v600
      %v668 = vunpack.c.l.b16 %v601
      %v669 = vunpack.c.l.b16 %v602
      %v670 = vunpack.c.l.b16 %v603
      %v671 = vunpack.c.l.b16 %v604
      %v672 = vunpack.c.l.b16 %v605
      %v673 = vunpack.c.l.b16 %v606
      %v674 = vunpack.c.l.b16 %v607
      %v675 = vunpack.c.l.b16 %v608
      %v676 = vunpack.c.l.b16 %v609
      %v677 = vunpack.c.l.b16 %v610
      %v678 = vunpack.c.l.b16 %v611
      %v679 = vunpack.c.l.b16 %v612
      %v680 = vunpack.c.l.b16 %v613
      %v681 = vpack.c.b16 %v652, %v651
      %v682 = vpack.c.b16 %v654, %v653
      %v683 = vpack.c.b16 %v656, %v655
      %v684 = vpack.c.b16 %v658, %v657
      %v685 = vpack.c.b16 %v660, %v659
      %v686 = vpack.c.b16 %v662, %v661
      %v687 = vpack.c.b16 %v664, %v663
      %v688 = vpack.c.b16 %v666, %v665
      %v689 = vpack.c.b16 %v668, %v667
      %v690 = vpack.c.b16 %v670, %v669
      %v691 = vpack.c.b16 %v672, %v671
      %v692 = vpack.c.b16 %v674, %v673
      %v693 = vpack.c.b16 %v676, %v675
      %v694 = vpack.c.b16 %v678, %v677
      %v695 = vpack.c.b16 %v680, %v679
      %vm711 = vcmask 916480
      %v712 = vsel %vm711, %v583, 0
      %714 = vmatprep.subr.bf16.mxu0 0
      %715 = vmatpush1.bf16.msra.mxu0 %v681
      %716 = vmatprep.subr.bf16.mxu0 0
      %717 = vmatpush1.bf16.msra.mxu0 %v682
      %718 = vmatprep.subr.bf16.mxu0 0
      %719 = vmatpush1.bf16.msra.mxu0 %v683
      %720 = vmatprep.subr.bf16.mxu0 0
      %721 = vmatpush1.bf16.msra.mxu0 %v684
      %722 = vmatprep.subr.bf16.mxu0 0
      %723 = vmatpush1.bf16.msra.mxu0 %v685
      %724 = vmatprep.subr.bf16.mxu0 0
      %725 = vmatpush1.bf16.msra.mxu0 %v686
      %726 = vmatprep.subr.bf16.mxu0 0
      %727 = vmatpush1.bf16.msra.mxu0 %v687
      %728 = vmatprep.subr.bf16.mxu0 0
      %729 = vmatpush1.bf16.msra.mxu0 %v688
      %730 = vmatprep.subr.bf16.mxu0 0
      %731 = vmatpush1.bf16.msra.mxu0 %v689
      %732 = vmatprep.subr.bf16.mxu0 0
      %733 = vmatpush1.bf16.msra.mxu0 %v690
      %734 = vmatprep.subr.bf16.mxu0 0
      %735 = vmatpush1.bf16.msra.mxu0 %v691
      %736 = vmatprep.subr.bf16.mxu0 0
      %737 = vmatpush1.bf16.msra.mxu0 %v692
      %738 = vmatprep.subr.bf16.mxu0 0
      %739 = vmatpush1.bf16.msra.mxu0 %v693
      %740 = vmatprep.subr.bf16.mxu0 0
      %741 = vmatpush1.bf16.msra.mxu0 %v694
      %742 = vmatprep.subr.bf16.mxu0 0
      %743 = vmatpush1.bf16.msra.mxu0 %v695
      %744 = vmatprep.subr.bf16.mxu0 0
      %745 = vmatpush1.bf16.msra.mxu0 0
      %746 = vmatprep.mubr.bf16.mxu0 %v712
      %747 = vmatmul.mubr.bf16.gmra.mrb[0].mxu0 %v576
      %v748 = vpop.f32.mrb[0].mxu0
      %v749 = vadd.f32 %v619, %v748
      %v750 = vpop.f32.mrb[0].mxu0
      %v751 = vpop.f32.mrb[0].mxu0
      %v752 = vadd.f32 %v619, %v751
      %v753 = vpop.f32.mrb[0].mxu0
      %754 = vdwg.mxu0
      %v755 = vmax.f32 %v749, 0.0
      %v756 = vmax.f32 %v752, 0.0
      %v757 = vpack.c.bf16 %v756, %v755
      %v758 = vld [vmem:[%s6] sm:$0xf]
      %v759 = vld [vmem:[%s6 + $0x4] sm:$0xf]
      %v760 = vld [vmem:[%s6 + $0x8] sm:$0xf]
      %v761 = vld [vmem:[%s6 + $0xc] sm:$0xf]
      %v762 = vld [vmem:[%s6 + $0x10] sm:$0xf]
      %v763 = vld [vmem:[%s6 + $0x14] sm:$0xf]
      %v764 = vld [vmem:[%s7] sm:$0x1]
      %v766 = vlaneseq
      %v767 = vshrl.u32 %v766, 7
      %v768 = vsub.s32 0, %v767
      %v769 = vrot.slane %v764, %v768
      %v777 = vunpack.c.l.b16 %v758
      %v778 = vunpack.c.l.b16 %v759
      %v779 = vunpack.c.l.b16 %v760
      %v780 = vunpack.c.l.b16 %v761
      %v781 = vunpack.c.l.b16 %v762
      %v782 = vunpack.c.l.b16 %v763
      %v783 = vpack.c.b16 %v778, %v777
      %v784 = vpack.c.b16 %v780, %v779
      %v785 = vpack.c.b16 %v782, %v781
      %v790 = vsel %vm391, %v757, 0
      %792 = vmatprep.subr.bf16.mxu0 0
      %793 = vmatpush1.bf16.msra.mxu0 %v783
      %794 = vmatprep.subr.bf16.mxu0 0
      %795 = vmatpush1.bf16.msra.mxu0 %v784
      %796 = vmatprep.subr.bf16.mxu0 0
      %797 = vmatpush1.bf16.msra.mxu0 %v785
      %798 = vmatprep.subr.bf16.mxu0 0
      %799 = vmatpush1.bf16.msra.mxu0 0
      %800 = vmatprep.subr.bf16.mxu0 0
      %801 = vmatpush1.bf16.msra.mxu0 0
      %802 = vmatprep.subr.bf16.mxu0 0
      %803 = vmatpush1.bf16.msra.mxu0 0
      %804 = vmatprep.subr.bf16.mxu0 0
      %805 = vmatpush1.bf16.msra.mxu0 0
      %806 = vmatprep.subr.bf16.mxu0 0
      %807 = vmatpush1.bf16.msra.mxu0 0
      %808 = vmatprep.subr.bf16.mxu0 0
      %809 = vmatpush1.bf16.msra.mxu0 0
      %810 = vmatprep.subr.bf16.mxu0 0
      %811 = vmatpush1.bf16.msra.mxu0 0
      %812 = vmatprep.subr.bf16.mxu0 0
      %813 = vmatpush1.bf16.msra.mxu0 0
      %814 = vmatprep.subr.bf16.mxu0 0
      %815 = vmatpush1.bf16.msra.mxu0 0
      %816 = vmatprep.subr.bf16.mxu0 0
      %817 = vmatpush1.bf16.msra.mxu0 0
      %818 = vmatprep.subr.bf16.mxu0 0
      %819 = vmatpush1.bf16.msra.mxu0 0
      %820 = vmatprep.subr.bf16.mxu0 0
      %821 = vmatpush1.bf16.msra.mxu0 0
      %822 = vmatprep.subr.bf16.mxu0 0
      %823 = vmatpush1.bf16.msra.mxu0 0
      %824 = vmatprep.mubr.bf16.mxu0 0
      %825 = vmatmul.mubr.bf16.gmra.mrb[0].mxu0 %v790
      %v826 = vpop.f32.mrb[0].mxu0
      %v827 = vadd.f32 %v769, %v826
      %v828 = vpop.f32.mrb[0].mxu0
      %v829 = vpop.f32.mrb[0].mxu0
      %v830 = vadd.f32 %v769, %v829
      %v831 = vpop.f32.mrb[0].mxu0
      %832 = vdwg.mxu0
      %v833 = vlaneseq
      %v834 = vshrl.u32 %v833, 7
      %v835 = vadd.s32 %v834, 8
      %s836 = sld [smem:[#allocation5 + %s25]]
      %v837 = vstv %s836
      %vm838 = vcmp.lt.s32.totalorder %v834, %v837
      %vm839 = vcmp.lt.s32.totalorder %v835, %v837
      %v840 = vsel %vm838, 1, 0
      %v841 = vsel %vm839, 1, 0
      %v842 = vcvt.s32.f32 %v840
      %v843 = vcvt.s32.f32 %v841
      %v844 = vmul.f32 %v827, %v842
      %v845 = vmul.f32 %v830, %v843
      %v846 = vpack.c.bf16 %v845, %v844
      %v848 = vunpack.c.l.b16 %v846
      %v849 = vunpack.c.h.b16 %v846
      %v850 = vpack.c.b16 %v848, %v848
      %v851 = vpack.c.b16 %v849, %v849
      %854 = vst [vmem:[%s285] sm:$0xf] %v850
      %855 = vst [vmem:[%s285 + $0x4] sm:$0xf] %v851
      %p856 = scmp.lt.s32.totalorder %s25, 1
      %s857 = scalar_select %p856, %s25, 1
      %s858 = smul.addr %s857, 2
      %s859 = smul.addr %s858, 4
      %s860 = scalar_lea.vmem %s8, %s859
      // Predicated region
      $region49: #{cnn_crf_forward.2} parent=47 // pred_check
        %p861 = pneg %p195
      $region50: #{cnn_crf_forward.2} parent=47 // pred_check_branch
        %863 = sbr.rel (%p861) target = $region52
      $region51: #{cnn_crf_forward.2} parent=47 // pred_region
        _
      $region52: #{cnn_crf_forward.2} parent=47 // pred_fallthru
        _
    $region48: #{cnn_crf_forward.2} parent=5 // pred_fallthru
      _
    %p864 = scmp.le.s32.totalorder 2, %s20
    // Predicated region
    $region53: #{cnn_crf_forward.2} parent=5 // pred_check
      %p865 = pneg %p864
    $region54: #{cnn_crf_forward.2} parent=5 // pred_check_branch
      %867 = sbr.rel (%p865) target = $region56
    $region55: #{cnn_crf_forward.2} parent=5 // pred_region
      %s868 = ssub.s32 %s20, 2
      // Predicated region
      $region57: #{cnn_crf_forward.2} parent=55 // pred_check
        %p869 = pneg %p201
      $region58: #{cnn_crf_forward.2} parent=55 // pred_check_branch
        %871 = sbr.rel (%p869) target = $region60
      $region59: #{cnn_crf_forward.2} parent=55 // pred_region
        %p872 = scmp.lt.s32.totalorder %s26, 1
        %s873 = scalar_select %p872, %s26, 1
        %s874 = smul.addr %s873, 2
        %s875 = smul.addr %s874, 4
        %s876 = scalar_lea.vmem %s8, %s875
      $region60: #{cnn_crf_forward.2} parent=55 // pred_fallthru
        _
    $region56: #{cnn_crf_forward.2} parent=5 // pred_fallthru
      _
  $region6: #{cnn_crf_forward.2} parent=0 // loop_footer
    %s24 = sadd.s32 1, %s20
  $region7: #{cnn_crf_forward.2} parent=0 // loop_footer_branch
    %19 = sbr.rel target = $region3
  $region8: #{cnn_crf_forward.2} parent=0 // loop_exit
    _

</llo_original>
